<compile_context>
chip_gen: v5e
topology: v5e:2x2
jax: 0.10.0
libtpu: 0.0.40
codegen_flags: <defaults>
</compile_context>

<pallas_src>
import jax
import jax.numpy as jnp
from jax.experimental import pallas as pl
from jax.experimental.pallas import tpu as pltpu


# ------------------------------ kernels ------------------------------------


def _matmul_kernel_f32out(x_ref, y_ref, o_ref):
    """f32 output: accumulate directly into the k-resident output tile."""
    @pl.when(pl.program_id(2) == 0)
    def _():
        o_ref[...] = jnp.zeros_like(o_ref)

    o_ref[...] += jnp.dot(
        x_ref[...], y_ref[...], preferred_element_type=jnp.float32
    )


def _matmul_kernel_acc(x_ref, y_ref, o_ref, acc_ref):
    """Narrow output dtype: f32 scratch accumulator + cast on the last k step."""
    @pl.when(pl.program_id(2) == 0)
    def _():
        acc_ref[...] = jnp.zeros_like(acc_ref)

    acc_ref[...] += jnp.dot(
        x_ref[...], y_ref[...], preferred_element_type=jnp.float32
    )

    @pl.when(pl.program_id(2) == pl.num_programs(2) - 1)
    def _():
        o_ref[...] = acc_ref[...].astype(o_ref.dtype)


# ------------------------------ wrapper -------------------------------------


def _pick_tile(dim: int, preferred: int, align: int) -> int:
    """Largest tile <= preferred that (a) divides dim and (b) is a multiple of
    `align`, or the full dim if the dim is small / no aligned divisor exists
    (a full-extent block is always legal)."""
    if dim <= preferred:
        return dim
    best = None
    t = (preferred // align) * align
    while t >= align:
        if dim % t == 0:
            best = t
            break
        t -= align
    return best if best is not None else dim


def mme_matmul(x, y, *, tm=512, tn=512, tk=1024):
    """Equivalent of MmeModule.forward: torch.matmul(x, y) for 2-D inputs."""
    M, K = x.shape
    K2, N = y.shape
    assert K == K2, "inner dimensions must match"

    # Tile selection: respect (sublane=8, lane=128) block-divisibility rules.
    # tm is a sublane dim (x rows, out rows); tn/tk appear as lane dims.
    tm = _pick_tile(M, tm, 8)
    tn = _pick_tile(N, tn, 128)
    tk = _pick_tile(K, tk, 128)
    assert M % tm == 0 and N % tn == 0 and K % tk == 0

    out_dtype = x.dtype
    out_itemsize = jnp.dtype(out_dtype).itemsize
    in_itemsize = jnp.dtype(x.dtype).itemsize
    use_direct_acc = out_dtype == jnp.float32

    # --- VMEM budget: 2x double-buffered inputs + 2x output + optional acc ---
    need_bytes = (
        2 * (tm * tk + tk * tn) * in_itemsize
        + 2 * tm * tn * out_itemsize
        + (0 if use_direct_acc else tm * tn * 4)
    )
    vmem_limit = max(min(int(need_bytes * 1.5) + (8 << 20), 100 << 20), 32 << 20)

    cost = pl.CostEstimate(
        flops=2 * M * N * K,
        transcendentals=0,
        bytes_accessed=in_itemsize * (M * K + K * N) + out_itemsize * M * N,
    )

    grid = (M // tm, N // tn, K // tk)
    in_specs = [
        pl.BlockSpec((tm, tk), lambda i, j, k: (i, k)),
        pl.BlockSpec((tk, tn), lambda i, j, k: (k, j)),
    ]
    out_spec = pl.BlockSpec((tm, tn), lambda i, j, k: (i, j))

    kernel = _matmul_kernel_f32out if use_direct_acc else _matmul_kernel_acc
    scratch = [] if use_direct_acc else [pltpu.VMEM((tm, tn), jnp.float32)]

    return pl.pallas_call(
        kernel,
        out_shape=jax.ShapeDtypeStruct((M, N), out_dtype),
        grid_spec=pltpu.PrefetchScalarGridSpec(
            num_scalar_prefetch=0,
            grid=grid,
            in_specs=in_specs,
            out_specs=out_spec,
            scratch_shapes=scratch,
        ),
        compiler_params=pltpu.CompilerParams(
            # M/N tiles are independent (megacore-shardable on v7x); K is the
            # sequential reduction axis and must stay last / "arbitrary".
            dimension_semantics=("parallel", "parallel", "arbitrary"),
            vmem_limit_bytes=vmem_limit,
        ),
        cost_estimate=cost,
    )(x, y)


if __name__ == "__main__":
    key = jax.random.PRNGKey(0)
    kx, ky = jax.random.split(key)

    # Small, MXU/lane-friendly shapes: x (M=256, K=512), y (K=512, N=256).
    M, K, N = 256, 512, 256
    x = jax.random.normal(kx, (M, K), dtype=jnp.float32)
    y = jax.random.normal(ky, (K, N), dtype=jnp.float32)

    out = mme_matmul(x, y)
    jax.block_until_ready(out)

    # Correctness check against plain JAX reference.
    ref = jnp.matmul(x, y)
    assert out.shape == (M, N)
    assert jnp.allclose(out, ref, atol=1e-3, rtol=1e-3)

    print("KERNEL_OK")
</pallas_src>

<mosaic_0001>
module attributes {stable_mosaic.version = 11 : i64} {
  func.func @_matmul_kernel_f32out(%arg0: i32, %arg1: i32, %arg2: i32, %arg3: memref<256x512xf32, #tpu.memory_space<vmem>>, %arg4: memref<512x256xf32, #tpu.memory_space<vmem>>, %arg5: memref<256x256xf32, #tpu.memory_space<vmem>>) attributes {dimension_semantics = [#tpu.dimension_semantics<parallel>, #tpu.dimension_semantics<parallel>, #tpu.dimension_semantics<arbitrary>], iteration_bounds = array<i64: 1, 1, 1>, scalar_prefetch = 0 : i64, scratch_operands = 0 : i64, tpu.core_type = #tpu.core_type<tc>, window_params = [{transform_indices = @transform_0, window_bounds = array<i64: 256, 512>}, {transform_indices = @transform_1, window_bounds = array<i64: 512, 256>}, {transform_indices = @transform_2, window_bounds = array<i64: 256, 256>}]} {
    %c0_i32 = arith.constant 0 : i32
    %0 = arith.cmpi eq, %arg2, %c0_i32 : i32
    %1 = arith.extui %0 : i1 to i32
    %c0_i32_0 = arith.constant 0 : i32
    %2 = arith.cmpi ne, %1, %c0_i32_0 : i32
    scf.if %2 {
      %cst_8 = arith.constant 0.000000e+00 : f32
      %9 = vector.broadcast %cst_8 : f32 to vector<256x256xf32>
      %c0_9 = arith.constant 0 : index
      %c0_10 = arith.constant 0 : index
      %10 = vector.load %arg5[%c0_9, %c0_10] : memref<256x256xf32, #tpu.memory_space<vmem>>, vector<256x256xf32>
      tpu.vector_store %arg5[%c0_9, %c0_10], %9 {strides = array<i32>} : memref<256x256xf32, #tpu.memory_space<vmem>>, vector<256x256xf32>,
    } else {
    }
    %c0 = arith.constant 0 : index
    %c0_1 = arith.constant 0 : index
    %3 = vector.load %arg5[%c0, %c0_1] : memref<256x256xf32, #tpu.memory_space<vmem>>, vector<256x256xf32>
    %c0_2 = arith.constant 0 : index
    %c0_3 = arith.constant 0 : index
    %4 = vector.load %arg3[%c0_2, %c0_3] : memref<256x512xf32, #tpu.memory_space<vmem>>, vector<256x512xf32>
    %c0_4 = arith.constant 0 : index
    %c0_5 = arith.constant 0 : index
    %5 = vector.load %arg4[%c0_4, %c0_5] : memref<512x256xf32, #tpu.memory_space<vmem>>, vector<512x256xf32>
    %cst = arith.constant dense<0.000000e+00> : vector<256x256xf32>
    %6 = tpu.matmul %4, %5, %cst {dimension_numbers = #tpu.dot_dimension_numbers<[1], [0], [0], [1], [0, 0, 1, 1], [], []>} : vector<256x512xf32>, vector<512x256xf32>, vector<256x256xf32> -> vector<256x256xf32>
    %7 = arith.addf %3, %6 : vector<256x256xf32>
    %c0_6 = arith.constant 0 : index
    %c0_7 = arith.constant 0 : index
    %8 = vector.load %arg5[%c0_6, %c0_7] : memref<256x256xf32, #tpu.memory_space<vmem>>, vector<256x256xf32>
    tpu.vector_store %arg5[%c0_6, %c0_7], %7 {strides = array<i32>} : memref<256x256xf32, #tpu.memory_space<vmem>>, vector<256x256xf32>,
    return
  }
  func.func @transform_0(%arg0: i32, %arg1: i32, %arg2: i32) -> (i32, i32) {
    %c0_i32 = arith.constant 0 : i32
    return %arg0, %arg2 : i32, i32
  }
  func.func @transform_1(%arg0: i32, %arg1: i32, %arg2: i32) -> (i32, i32) {
    %c0_i32 = arith.constant 0 : i32
    return %arg2, %arg1 : i32, i32
  }
  func.func @transform_2(%arg0: i32, %arg1: i32, %arg2: i32) -> (i32, i32) {
    %c0_i32 = arith.constant 0 : i32
    return %arg0, %arg1 : i32, i32
  }
}

</mosaic_0001>

<llo_original>
// kernel: tpu_custom_call.1
$region0: #{tpu_custom_call.1}
  #allocation0 [shape = 'u32[]', space=smem, size = 0x4, offset = 0x4, fixed_abs, tag = 'smem constant byte address 0x4 - core index']
  #allocation1 [shape = 'u32[72,128]{1,0:T(1,128)}', space=vmem, size = 0x9000, scoped, tag = 'internal scratch']
  %s0 = inlined_call_operand.hbm [shape: f32[256,512], index: 0, kind: input, shape index: {}]
  %s1 = inlined_call_operand.hbm [shape: f32[512,256], index: 1, kind: input, shape index: {}]
  %s2 = inlined_call_operand.hbm [shape: f32[256,256], index: 2, kind: output, shape index: {}]
  %s3 = sld [smem:[#allocation0]]
  $region30: #{tpu_custom_call.1} parent=0
    _
  %s5 = ssub.s32 1, %s3
  %s6 = scalar_select 0, %s5, %s3
  $region1: #{tpu_custom_call.1} parent=0
    #allocation2 [shape = 'u8[524288]{0}', space=vmem, size = 0x80000, scoped, tag = 'input window, operand 0, single buffered']
    #allocation3 [shape = 's32[1]{0}', space=sflag, size = 0x4, scoped, tag = 'scoped memory for tpu_custom_call.1']
    #allocation4 [shape = 's32[1]{0}', space=sflag, size = 0x4, scoped, tag = 'scoped memory for tpu_custom_call.1']
    #allocation5 [shape = 'u8[524288]{0}', space=vmem, size = 0x80000, scoped, tag = 'input window, operand 1, single buffered']
    #allocation6 [shape = 's32[1]{0}', space=sflag, size = 0x4, scoped, tag = 'scoped memory for tpu_custom_call.1']
    #allocation7 [shape = 'u8[262144]{0}', space=vmem, size = 0x40000, scoped, tag = 'output window, operand 0, single buffered']
    %7 = vsyncpa [#allocation3], 0
    %8 = vsyncpa [#allocation6], 0
    %9 = vsyncpa [#allocation4], 0
    // Predicated region
    $region2: #{tpu_custom_call.1} parent=1 // pred_check
      _
    $region3: #{tpu_custom_call.1} parent=1 // pred_check_branch
      %11 = sbr.rel (0) target = $region5
    $region4: #{tpu_custom_call.1} parent=1 // pred_region
      %13 = vsyncadd [#allocation3], 0
      %s14 = sshll.u32 %s0, 4
      %s15 = int_to_ptr.hbm [resolvable:$true] %s14
      %s16 = sshll.u32 [#allocation2], 4
      %s17 = int_to_ptr.vmem [resolvable:$true] %s16
      %22 = dma.hbm_to_vmem [thread:$0]  %s15, 16384, %s17, [#allocation3], 512, 512, 32
    $region5: #{tpu_custom_call.1} parent=1 // pred_fallthru
      _
    // Predicated region
    $region6: #{tpu_custom_call.1} parent=1 // pred_check
      _
    $region7: #{tpu_custom_call.1} parent=1 // pred_check_branch
      %24 = sbr.rel (0) target = $region9
    $region8: #{tpu_custom_call.1} parent=1 // pred_region
      %26 = vsyncadd [#allocation6], 0
      %s27 = sshll.u32 %s1, 4
      %s28 = int_to_ptr.hbm [resolvable:$true] %s27
      %s29 = sshll.u32 [#allocation5], 4
      %s30 = int_to_ptr.vmem [resolvable:$true] %s29
      %35 = dma.hbm_to_vmem [thread:$0]  %s28, 16384, %s30, [#allocation6], 256, 256, 16
    $region9: #{tpu_custom_call.1} parent=1 // pred_fallthru
      _
    // Predicated region
    $region10: #{tpu_custom_call.1} parent=1 // pred_check
      _
    $region11: #{tpu_custom_call.1} parent=1 // pred_check_branch
      %37 = sbr.rel (0) target = $region13
    $region12: #{tpu_custom_call.1} parent=1 // pred_region
      %39 = dma.done [#allocation3], 16384
    $region13: #{tpu_custom_call.1} parent=1 // pred_fallthru
      _
    // Predicated region
    $region14: #{tpu_custom_call.1} parent=1 // pred_check
      _
    $region15: #{tpu_custom_call.1} parent=1 // pred_check_branch
      %41 = sbr.rel (0) target = $region17
    $region16: #{tpu_custom_call.1} parent=1 // pred_region
      %43 = dma.done [#allocation6], 16384
    $region17: #{tpu_custom_call.1} parent=1 // pred_fallthru
      _
    %p44 = scmp.eq.s32.totalorder 0, 0
    // Predicated region
    $region18: #{tpu_custom_call.1} parent=1 // pred_check
      %p45 = pneg %p44
    $region19: #{tpu_custom_call.1} parent=1 // pred_check_branch
      %47 = sbr.rel (%p45) target = $region21
    $region20: #{tpu_custom_call.1} parent=1 // pred_region
      %48 = vst [vmem:[#allocation7] sm:$0xff] 0.0
      %49 = vst [vmem:[#allocation7 + $0x8] sm:$0xff] 0.0
      %50 = vst [vmem:[#allocation7 + $0x10] sm:$0xff] 0.0
      %51 = vst [vmem:[#allocation7 + $0x18] sm:$0xff] 0.0
      %52 = vst [vmem:[#allocation7 + $0x20] sm:$0xff] 0.0
      %53 = vst [vmem:[#allocation7 + $0x28] sm:$0xff] 0.0
      %54 = vst [vmem:[#allocation7 + $0x30] sm:$0xff] 0.0
      %55 = vst [vmem:[#allocation7 + $0x38] sm:$0xff] 0.0
      %56 = vst [vmem:[#allocation7 + $0x40] sm:$0xff] 0.0
      %57 = vst [vmem:[#allocation7 + $0x48] sm:$0xff] 0.0
      %58 = vst [vmem:[#allocation7 + $0x50] sm:$0xff] 0.0
      %59 = vst [vmem:[#allocation7 + $0x58] sm:$0xff] 0.0
      %60 = vst [vmem:[#allocation7 + $0x60] sm:$0xff] 0.0
      %61 = vst [vmem:[#allocation7 + $0x68] sm:$0xff] 0.0
      %62 = vst [vmem:[#allocation7 + $0x70] sm:$0xff] 0.0
      %63 = vst [vmem:[#allocation7 + $0x78] sm:$0xff] 0.0
      %64 = vst [vmem:[#allocation7 + $0x80] sm:$0xff] 0.0
      %65 = vst [vmem:[#allocation7 + $0x88] sm:$0xff] 0.0
      %66 = vst [vmem:[#allocation7 + $0x90] sm:$0xff] 0.0
      %67 = vst [vmem:[#allocation7 + $0x98] sm:$0xff] 0.0
      %68 = vst [vmem:[#allocation7 + $0xa0] sm:$0xff] 0.0
      %69 = vst [vmem:[#allocation7 + $0xa8] sm:$0xff] 0.0
      %70 = vst [vmem:[#allocation7 + $0xb0] sm:$0xff] 0.0
      %71 = vst [vmem:[#allocation7 + $0xb8] sm:$0xff] 0.0
      %72 = vst [vmem:[#allocation7 + $0xc0] sm:$0xff] 0.0
      %73 = vst [vmem:[#allocation7 + $0xc8] sm:$0xff] 0.0
      %74 = vst [vmem:[#allocation7 + $0xd0] sm:$0xff] 0.0
      %75 = vst [vmem:[#allocation7 + $0xd8] sm:$0xff] 0.0
      %76 = vst [vmem:[#allocation7 + $0xe0] sm:$0xff] 0.0
      %77 = vst [vmem:[#allocation7 + $0xe8] sm:$0xff] 0.0
      %78 = vst [vmem:[#allocation7 + $0xf0] sm:$0xff] 0.0
      %79 = vst [vmem:[#allocation7 + $0xf8] sm:$0xff] 0.0
      %80 = vst [vmem:[#allocation7 + $0x100] sm:$0xff] 0.0
      %81 = vst [vmem:[#allocation7 + $0x108] sm:$0xff] 0.0
      %82 = vst [vmem:[#allocation7 + $0x110] sm:$0xff] 0.0
      %83 = vst [vmem:[#allocation7 + $0x118] sm:$0xff] 0.0
      %84 = vst [vmem:[#allocation7 + $0x120] sm:$0xff] 0.0
      %85 = vst [vmem:[#allocation7 + $0x128] sm:$0xff] 0.0
      %86 = vst [vmem:[#allocation7 + $0x130] sm:$0xff] 0.0
      %87 = vst [vmem:[#allocation7 + $0x138] sm:$0xff] 0.0
      %88 = vst [vmem:[#allocation7 + $0x140] sm:$0xff] 0.0
      %89 = vst [vmem:[#allocation7 + $0x148] sm:$0xff] 0.0
      %90 = vst [vmem:[#allocation7 + $0x150] sm:$0xff] 0.0
      %91 = vst [vmem:[#allocation7 + $0x158] sm:$0xff] 0.0
      %92 = vst [vmem:[#allocation7 + $0x160] sm:$0xff] 0.0
      %93 = vst [vmem:[#allocation7 + $0x168] sm:$0xff] 0.0
      %94 = vst [vmem:[#allocation7 + $0x170] sm:$0xff] 0.0
      %95 = vst [vmem:[#allocation7 + $0x178] sm:$0xff] 0.0
      %96 = vst [vmem:[#allocation7 + $0x180] sm:$0xff] 0.0
      %97 = vst [vmem:[#allocation7 + $0x188] sm:$0xff] 0.0
      %98 = vst [vmem:[#allocation7 + $0x190] sm:$0xff] 0.0
      %99 = vst [vmem:[#allocation7 + $0x198] sm:$0xff] 0.0
      %100 = vst [vmem:[#allocation7 + $0x1a0] sm:$0xff] 0.0
      %101 = vst [vmem:[#allocation7 + $0x1a8] sm:$0xff] 0.0
      %102 = vst [vmem:[#allocation7 + $0x1b0] sm:$0xff] 0.0
      %103 = vst [vmem:[#allocation7 + $0x1b8] sm:$0xff] 0.0
      %104 = vst [vmem:[#allocation7 + $0x1c0] sm:$0xff] 0.0
      %105 = vst [vmem:[#allocation7 + $0x1c8] sm:$0xff] 0.0
      %106 = vst [vmem:[#allocation7 + $0x1d0] sm:$0xff] 0.0
      %107 = vst [vmem:[#allocation7 + $0x1d8] sm:$0xff] 0.0
      %108 = vst [vmem:[#allocation7 + $0x1e0] sm:$0xff] 0.0
      %109 = vst [vmem:[#allocation7 + $0x1e8] sm:$0xff] 0.0
      %110 = vst [vmem:[#allocation7 + $0x1f0] sm:$0xff] 0.0
      %111 = vst [vmem:[#allocation7 + $0x1f8] sm:$0xff] 0.0
    $region21: #{tpu_custom_call.1} parent=1 // pred_fallthru
      _
    %v112 = vld [vmem:[#allocation7] sm:$0xff]
    %v113 = vld [vmem:[#allocation7 + $0x8] sm:$0xff]
    %v114 = vld [vmem:[#allocation7 + $0x10] sm:$0xff]
    %v115 = vld [vmem:[#allocation7 + $0x18] sm:$0xff]
    %v116 = vld [vmem:[#allocation7 + $0x20] sm:$0xff]
    %v117 = vld [vmem:[#allocation7 + $0x28] sm:$0xff]
    %v118 = vld [vmem:[#allocation7 + $0x30] sm:$0xff]
    %v119 = vld [vmem:[#allocation7 + $0x38] sm:$0xff]
    %v120 = vld [vmem:[#allocation7 + $0x40] sm:$0xff]
    %v121 = vld [vmem:[#allocation7 + $0x48] sm:$0xff]
    %v122 = vld [vmem:[#allocation7 + $0x50] sm:$0xff]
    %v123 = vld [vmem:[#allocation7 + $0x58] sm:$0xff]
    %v124 = vld [vmem:[#allocation7 + $0x60] sm:$0xff]
    %v125 = vld [vmem:[#allocation7 + $0x68] sm:$0xff]
    %v126 = vld [vmem:[#allocation7 + $0x70] sm:$0xff]
    %v127 = vld [vmem:[#allocation7 + $0x78] sm:$0xff]
    %v128 = vld [vmem:[#allocation7 + $0x80] sm:$0xff]
    %v129 = vld [vmem:[#allocation7 + $0x88] sm:$0xff]
    %v130 = vld [vmem:[#allocation7 + $0x90] sm:$0xff]
    %v131 = vld [vmem:[#allocation7 + $0x98] sm:$0xff]
    %v132 = vld [vmem:[#allocation7 + $0xa0] sm:$0xff]
    %v133 = vld [vmem:[#allocation7 + $0xa8] sm:$0xff]
    %v134 = vld [vmem:[#allocation7 + $0xb0] sm:$0xff]
    %v135 = vld [vmem:[#allocation7 + $0xb8] sm:$0xff]
    %v136 = vld [vmem:[#allocation7 + $0xc0] sm:$0xff]
    %v137 = vld [vmem:[#allocation7 + $0xc8] sm:$0xff]
    %v138 = vld [vmem:[#allocation7 + $0xd0] sm:$0xff]
    %v139 = vld [vmem:[#allocation7 + $0xd8] sm:$0xff]
    %v140 = vld [vmem:[#allocation7 + $0xe0] sm:$0xff]
    %v141 = vld [vmem:[#allocation7 + $0xe8] sm:$0xff]
    %v142 = vld [vmem:[#allocation7 + $0xf0] sm:$0xff]
    %v143 = vld [vmem:[#allocation7 + $0xf8] sm:$0xff]
    %v144 = vld [vmem:[#allocation7 + $0x100] sm:$0xff]
    %v145 = vld [vmem:[#allocation7 + $0x108] sm:$0xff]
    %v146 = vld [vmem:[#allocation7 + $0x110] sm:$0xff]
    %v147 = vld [vmem:[#allocation7 + $0x118] sm:$0xff]
    %v148 = vld [vmem:[#allocation7 + $0x120] sm:$0xff]
    %v149 = vld [vmem:[#allocation7 + $0x128] sm:$0xff]
    %v150 = vld [vmem:[#allocation7 + $0x130] sm:$0xff]
    %v151 = vld [vmem:[#allocation7 + $0x138] sm:$0xff]
    %v152 = vld [vmem:[#allocation7 + $0x140] sm:$0xff]
    %v153 = vld [vmem:[#allocation7 + $0x148] sm:$0xff]
    %v154 = vld [vmem:[#allocation7 + $0x150] sm:$0xff]
    %v155 = vld [vmem:[#allocation7 + $0x158] sm:$0xff]
    %v156 = vld [vmem:[#allocation7 + $0x160] sm:$0xff]
    %v157 = vld [vmem:[#allocation7 + $0x168] sm:$0xff]
    %v158 = vld [vmem:[#allocation7 + $0x170] sm:$0xff]
    %v159 = vld [vmem:[#allocation7 + $0x178] sm:$0xff]
    %v160 = vld [vmem:[#allocation7 + $0x180] sm:$0xff]
    %v161 = vld [vmem:[#allocation7 + $0x188] sm:$0xff]
    %v162 = vld [vmem:[#allocation7 + $0x190] sm:$0xff]
    %v163 = vld [vmem:[#allocation7 + $0x198] sm:$0xff]
    %v164 = vld [vmem:[#allocation7 + $0x1a0] sm:$0xff]
    %v165 = vld [vmem:[#allocation7 + $0x1a8] sm:$0xff]
    %v166 = vld [vmem:[#allocation7 + $0x1b0] sm:$0xff]
    %v167 = vld [vmem:[#allocation7 + $0x1b8] sm:$0xff]
    %v168 = vld [vmem:[#allocation7 + $0x1c0] sm:$0xff]
    %v169 = vld [vmem:[#allocation7 + $0x1c8] sm:$0xff]
    %v170 = vld [vmem:[#allocation7 + $0x1d0] sm:$0xff]
    %v171 = vld [vmem:[#allocation7 + $0x1d8] sm:$0xff]
    %v172 = vld [vmem:[#allocation7 + $0x1e0] sm:$0xff]
    %v173 = vld [vmem:[#allocation7 + $0x1e8] sm:$0xff]
    %v174 = vld [vmem:[#allocation7 + $0x1f0] sm:$0xff]
    %v175 = vld [vmem:[#allocation7 + $0x1f8] sm:$0xff]
    %v176 = vld [vmem:[#allocation2] sm:$0xff]
    %v177 = vld [vmem:[#allocation2 + $0x8] sm:$0xff]
    %v178 = vld [vmem:[#allocation2 + $0x10] sm:$0xff]
    %v179 = vld [vmem:[#allocation2 + $0x18] sm:$0xff]
    %v180 = vld [vmem:[#allocation2 + $0x20] sm:$0xff]
    %v181 = vld [vmem:[#allocation2 + $0x28] sm:$0xff]
    %v182 = vld [vmem:[#allocation2 + $0x30] sm:$0xff]
    %v183 = vld [vmem:[#allocation2 + $0x38] sm:$0xff]
    %v184 = vld [vmem:[#allocation2 + $0x40] sm:$0xff]
    %v185 = vld [vmem:[#allocation2 + $0x48] sm:$0xff]
    %v186 = vld [vmem:[#allocation2 + $0x50] sm:$0xff]
    %v187 = vld [vmem:[#allocation2 + $0x58] sm:$0xff]
    %v188 = vld [vmem:[#allocation2 + $0x60] sm:$0xff]
    %v189 = vld [vmem:[#allocation2 + $0x68] sm:$0xff]
    %v190 = vld [vmem:[#allocation2 + $0x70] sm:$0xff]
    %v191 = vld [vmem:[#allocation2 + $0x78] sm:$0xff]
    %v192 = vld [vmem:[#allocation2 + $0x80] sm:$0xff]
    %v193 = vld [vmem:[#allocation2 + $0x88] sm:$0xff]
    %v194 = vld [vmem:[#allocation2 + $0x90] sm:$0xff]
    %v195 = vld [vmem:[#allocation2 + $0x98] sm:$0xff]
    %v196 = vld [vmem:[#allocation2 + $0xa0] sm:$0xff]
    %v197 = vld [vmem:[#allocation2 + $0xa8] sm:$0xff]
    %v198 = vld [vmem:[#allocation2 + $0xb0] sm:$0xff]
    %v199 = vld [vmem:[#allocation2 + $0xb8] sm:$0xff]
    %v200 = vld [vmem:[#allocation2 + $0xc0] sm:$0xff]
    %v201 = vld [vmem:[#allocation2 + $0xc8] sm:$0xff]
    %v202 = vld [vmem:[#allocation2 + $0xd0] sm:$0xff]
    %v203 = vld [vmem:[#allocation2 + $0xd8] sm:$0xff]
    %v204 = vld [vmem:[#allocation2 + $0xe0] sm:$0xff]
    %v205 = vld [vmem:[#allocation2 + $0xe8] sm:$0xff]
    %v206 = vld [vmem:[#allocation2 + $0xf0] sm:$0xff]
    %v207 = vld [vmem:[#allocation2 + $0xf8] sm:$0xff]
    %v208 = vld [vmem:[#allocation2 + $0x100] sm:$0xff]
    %v209 = vld [vmem:[#allocation2 + $0x108] sm:$0xff]
    %v210 = vld [vmem:[#allocation2 + $0x110] sm:$0xff]
    %v211 = vld [vmem:[#allocation2 + $0x118] sm:$0xff]
    %v212 = vld [vmem:[#allocation2 + $0x120] sm:$0xff]
    %v213 = vld [vmem:[#allocation2 + $0x128] sm:$0xff]
    %v214 = vld [vmem:[#allocation2 + $0x130] sm:$0xff]
    %v215 = vld [vmem:[#allocation2 + $0x138] sm:$0xff]
    %v216 = vld [vmem:[#allocation2 + $0x140] sm:$0xff]
    %v217 = vld [vmem:[#allocation2 + $0x148] sm:$0xff]
    %v218 = vld [vmem:[#allocation2 + $0x150] sm:$0xff]
    %v219 = vld [vmem:[#allocation2 + $0x158] sm:$0xff]
    %v220 = vld [vmem:[#allocation2 + $0x160] sm:$0xff]
    %v221 = vld [vmem:[#allocation2 + $0x168] sm:$0xff]
    %v222 = vld [vmem:[#allocation2 + $0x170] sm:$0xff]
    %v223 = vld [vmem:[#allocation2 + $0x178] sm:$0xff]
    %v224 = vld [vmem:[#allocation2 + $0x180] sm:$0xff]
    %v225 = vld [vmem:[#allocation2 + $0x188] sm:$0xff]
    %v226 = vld [vmem:[#allocation2 + $0x190] sm:$0xff]
    %v227 = vld [vmem:[#allocation2 + $0x198] sm:$0xff]
    %v228 = vld [vmem:[#allocation2 + $0x1a0] sm:$0xff]
    %v229 = vld [vmem:[#allocation2 + $0x1a8] sm:$0xff]
    %v230 = vld [vmem:[#allocation2 + $0x1b0] sm:$0xff]
    %v231 = vld [vmem:[#allocation2 + $0x1b8] sm:$0xff]
    %v232 = vld [vmem:[#allocation2 + $0x1c0] sm:$0xff]
    %v233 = vld [vmem:[#allocation2 + $0x1c8] sm:$0xff]
    %v234 = vld [vmem:[#allocation2 + $0x1d0] sm:$0xff]
    %v235 = vld [vmem:[#allocation2 + $0x1d8] sm:$0xff]
    %v236 = vld [vmem:[#allocation2 + $0x1e0] sm:$0xff]
    %v237 = vld [vmem:[#allocation2 + $0x1e8] sm:$0xff]
    %v238 = vld [vmem:[#allocation2 + $0x1f0] sm:$0xff]
    %v239 = vld [vmem:[#allocation2 + $0x1f8] sm:$0xff]
    %v240 = vld [vmem:[#allocation2 + $0x200] sm:$0xff]
    %v241 = vld [vmem:[#allocation2 + $0x208] sm:$0xff]
    %v242 = vld [vmem:[#allocation2 + $0x210] sm:$0xff]
    %v243 = vld [vmem:[#allocation2 + $0x218] sm:$0xff]
    %v244 = vld [vmem:[#allocation2 + $0x220] sm:$0xff]
    %v245 = vld [vmem:[#allocation2 + $0x228] sm:$0xff]
    %v246 = vld [vmem:[#allocation2 + $0x230] sm:$0xff]
    %v247 = vld [vmem:[#allocation2 + $0x238] sm:$0xff]
    %v248 = vld [vmem:[#allocation2 + $0x240] sm:$0xff]
    %v249 = vld [vmem:[#allocation2 + $0x248] sm:$0xff]
    %v250 = vld [vmem:[#allocation2 + $0x250] sm:$0xff]
    %v251 = vld [vmem:[#allocation2 + $0x258] sm:$0xff]
    %v252 = vld [vmem:[#allocation2 + $0x260] sm:$0xff]
    %v253 = vld [vmem:[#allocation2 + $0x268] sm:$0xff]
    %v254 = vld [vmem:[#allocation2 + $0x270] sm:$0xff]
    %v255 = vld [vmem:[#allocation2 + $0x278] sm:$0xff]
    %v256 = vld [vmem:[#allocation2 + $0x280] sm:$0xff]
    %v257 = vld [vmem:[#allocation2 + $0x288] sm:$0xff]
    %v258 = vld [vmem:[#allocation2 + $0x290] sm:$0xff]
    %v259 = vld [vmem:[#allocation2 + $0x298] sm:$0xff]
    %v260 = vld [vmem:[#allocation2 + $0x2a0] sm:$0xff]
    %v261 = vld [vmem:[#allocation2 + $0x2a8] sm:$0xff]
    %v262 = vld [vmem:[#allocation2 + $0x2b0] sm:$0xff]
    %v263 = vld [vmem:[#allocation2 + $0x2b8] sm:$0xff]
    %v264 = vld [vmem:[#allocation2 + $0x2c0] sm:$0xff]
    %v265 = vld [vmem:[#allocation2 + $0x2c8] sm:$0xff]
    %v266 = vld [vmem:[#allocation2 + $0x2d0] sm:$0xff]
    %v267 = vld [vmem:[#allocation2 + $0x2d8] sm:$0xff]
    %v268 = vld [vmem:[#allocation2 + $0x2e0] sm:$0xff]
    %v269 = vld [vmem:[#allocation2 + $0x2e8] sm:$0xff]
    %v270 = vld [vmem:[#allocation2 + $0x2f0] sm:$0xff]
    %v271 = vld [vmem:[#allocation2 + $0x2f8] sm:$0xff]
    %v272 = vld [vmem:[#allocation2 + $0x300] sm:$0xff]
    %v273 = vld [vmem:[#allocation2 + $0x308] sm:$0xff]
    %v274 = vld [vmem:[#allocation2 + $0x310] sm:$0xff]
    %v275 = vld [vmem:[#allocation2 + $0x318] sm:$0xff]
    %v276 = vld [vmem:[#allocation2 + $0x320] sm:$0xff]
    %v277 = vld [vmem:[#allocation2 + $0x328] sm:$0xff]
    %v278 = vld [vmem:[#allocation2 + $0x330] sm:$0xff]
    %v279 = vld [vmem:[#allocation2 + $0x338] sm:$0xff]
    %v280 = vld [vmem:[#allocation2 + $0x340] sm:$0xff]
    %v281 = vld [vmem:[#allocation2 + $0x348] sm:$0xff]
    %v282 = vld [vmem:[#allocation2 + $0x350] sm:$0xff]
    %v283 = vld [vmem:[#allocation2 + $0x358] sm:$0xff]
    %v284 = vld [vmem:[#allocation2 + $0x360] sm:$0xff]
    %v285 = vld [vmem:[#allocation2 + $0x368] sm:$0xff]
    %v286 = vld [vmem:[#allocation2 + $0x370] sm:$0xff]
    %v287 = vld [vmem:[#allocation2 + $0x378] sm:$0xff]
    %v288 = vld [vmem:[#allocation2 + $0x380] sm:$0xff]
    %v289 = vld [vmem:[#allocation2 + $0x388] sm:$0xff]
    %v290 = vld [vmem:[#allocation2 + $0x390] sm:$0xff]
    %v291 = vld [vmem:[#allocation2 + $0x398] sm:$0xff]
    %v292 = vld [vmem:[#allocation2 + $0x3a0] sm:$0xff]
    %v293 = vld [vmem:[#allocation2 + $0x3a8] sm:$0xff]
    %v294 = vld [vmem:[#allocation2 + $0x3b0] sm:$0xff]
    %v295 = vld [vmem:[#allocation2 + $0x3b8] sm:$0xff]
    %v296 = vld [vmem:[#allocation2 + $0x3c0] sm:$0xff]
    %v297 = vld [vmem:[#allocation2 + $0x3c8] sm:$0xff]
    %v298 = vld [vmem:[#allocation2 + $0x3d0] sm:$0xff]
    %v299 = vld [vmem:[#allocation2 + $0x3d8] sm:$0xff]
    %v300 = vld [vmem:[#allocation2 + $0x3e0] sm:$0xff]
    %v301 = vld [vmem:[#allocation2 + $0x3e8] sm:$0xff]
    %v302 = vld [vmem:[#allocation2 + $0x3f0] sm:$0xff]
    %v303 = vld [vmem:[#allocation2 + $0x3f8] sm:$0xff]
    %v304 = vld [vmem:[#allocation5] sm:$0xff]
    %v305 = vld [vmem:[#allocation5 + $0x8] sm:$0xff]
    %v306 = vld [vmem:[#allocation5 + $0x10] sm:$0xff]
    %v307 = vld [vmem:[#allocation5 + $0x18] sm:$0xff]
    %v308 = vld [vmem:[#allocation5 + $0x20] sm:$0xff]
    %v309 = vld [vmem:[#allocation5 + $0x28] sm:$0xff]
    %v310 = vld [vmem:[#allocation5 + $0x30] sm:$0xff]
    %v311 = vld [vmem:[#allocation5 + $0x38] sm:$0xff]
    %v312 = vld [vmem:[#allocation5 + $0x40] sm:$0xff]
    %v313 = vld [vmem:[#allocation5 + $0x48] sm:$0xff]
    %v314 = vld [vmem:[#allocation5 + $0x50] sm:$0xff]
    %v315 = vld [vmem:[#allocation5 + $0x58] sm:$0xff]
    %v316 = vld [vmem:[#allocation5 + $0x60] sm:$0xff]
    %v317 = vld [vmem:[#allocation5 + $0x68] sm:$0xff]
    %v318 = vld [vmem:[#allocation5 + $0x70] sm:$0xff]
    %v319 = vld [vmem:[#allocation5 + $0x78] sm:$0xff]
    %v320 = vld [vmem:[#allocation5 + $0x80] sm:$0xff]
    %v321 = vld [vmem:[#allocation5 + $0x88] sm:$0xff]
    %v322 = vld [vmem:[#allocation5 + $0x90] sm:$0xff]
    %v323 = vld [vmem:[#allocation5 + $0x98] sm:$0xff]
    %v324 = vld [vmem:[#allocation5 + $0xa0] sm:$0xff]
    %v325 = vld [vmem:[#allocation5 + $0xa8] sm:$0xff]
    %v326 = vld [vmem:[#allocation5 + $0xb0] sm:$0xff]
    %v327 = vld [vmem:[#allocation5 + $0xb8] sm:$0xff]
    %v328 = vld [vmem:[#allocation5 + $0xc0] sm:$0xff]
    %v329 = vld [vmem:[#allocation5 + $0xc8] sm:$0xff]
    %v330 = vld [vmem:[#allocation5 + $0xd0] sm:$0xff]
    %v331 = vld [vmem:[#allocation5 + $0xd8] sm:$0xff]
    %v332 = vld [vmem:[#allocation5 + $0xe0] sm:$0xff]
    %v333 = vld [vmem:[#allocation5 + $0xe8] sm:$0xff]
    %v334 = vld [vmem:[#allocation5 + $0xf0] sm:$0xff]
    %v335 = vld [vmem:[#allocation5 + $0xf8] sm:$0xff]
    %v336 = vld [vmem:[#allocation5 + $0x100] sm:$0xff]
    %v337 = vld [vmem:[#allocation5 + $0x108] sm:$0xff]
    %v338 = vld [vmem:[#allocation5 + $0x110] sm:$0xff]
    %v339 = vld [vmem:[#allocation5 + $0x118] sm:$0xff]
    %v340 = vld [vmem:[#allocation5 + $0x120] sm:$0xff]
    %v341 = vld [vmem:[#allocation5 + $0x128] sm:$0xff]
    %v342 = vld [vmem:[#allocation5 + $0x130] sm:$0xff]
    %v343 = vld [vmem:[#allocation5 + $0x138] sm:$0xff]
    %v344 = vld [vmem:[#allocation5 + $0x140] sm:$0xff]
    %v345 = vld [vmem:[#allocation5 + $0x148] sm:$0xff]
    %v346 = vld [vmem:[#allocation5 + $0x150] sm:$0xff]
    %v347 = vld [vmem:[#allocation5 + $0x158] sm:$0xff]
    %v348 = vld [vmem:[#allocation5 + $0x160] sm:$0xff]
    %v349 = vld [vmem:[#allocation5 + $0x168] sm:$0xff]
    %v350 = vld [vmem:[#allocation5 + $0x170] sm:$0xff]
    %v351 = vld [vmem:[#allocation5 + $0x178] sm:$0xff]
    %v352 = vld [vmem:[#allocation5 + $0x180] sm:$0xff]
    %v353 = vld [vmem:[#allocation5 + $0x188] sm:$0xff]
    %v354 = vld [vmem:[#allocation5 + $0x190] sm:$0xff]
    %v355 = vld [vmem:[#allocation5 + $0x198] sm:$0xff]
    %v356 = vld [vmem:[#allocation5 + $0x1a0] sm:$0xff]
    %v357 = vld [vmem:[#allocation5 + $0x1a8] sm:$0xff]
    %v358 = vld [vmem:[#allocation5 + $0x1b0] sm:$0xff]
    %v359 = vld [vmem:[#allocation5 + $0x1b8] sm:$0xff]
    %v360 = vld [vmem:[#allocation5 + $0x1c0] sm:$0xff]
    %v361 = vld [vmem:[#allocation5 + $0x1c8] sm:$0xff]
    %v362 = vld [vmem:[#allocation5 + $0x1d0] sm:$0xff]
    %v363 = vld [vmem:[#allocation5 + $0x1d8] sm:$0xff]
    %v364 = vld [vmem:[#allocation5 + $0x1e0] sm:$0xff]
    %v365 = vld [vmem:[#allocation5 + $0x1e8] sm:$0xff]
    %v366 = vld [vmem:[#allocation5 + $0x1f0] sm:$0xff]
    %v367 = vld [vmem:[#allocation5 + $0x1f8] sm:$0xff]
    %v368 = vld [vmem:[#allocation5 + $0x200] sm:$0xff]
    %v369 = vld [vmem:[#allocation5 + $0x208] sm:$0xff]
    %v370 = vld [vmem:[#allocation5 + $0x210] sm:$0xff]
    %v371 = vld [vmem:[#allocation5 + $0x218] sm:$0xff]
    %v372 = vld [vmem:[#allocation5 + $0x220] sm:$0xff]
    %v373 = vld [vmem:[#allocation5 + $0x228] sm:$0xff]
    %v374 = vld [vmem:[#allocation5 + $0x230] sm:$0xff]
    %v375 = vld [vmem:[#allocation5 + $0x238] sm:$0xff]
    %v376 = vld [vmem:[#allocation5 + $0x240] sm:$0xff]
    %v377 = vld [vmem:[#allocation5 + $0x248] sm:$0xff]
    %v378 = vld [vmem:[#allocation5 + $0x250] sm:$0xff]
    %v379 = vld [vmem:[#allocation5 + $0x258] sm:$0xff]
    %v380 = vld [vmem:[#allocation5 + $0x260] sm:$0xff]
    %v381 = vld [vmem:[#allocation5 + $0x268] sm:$0xff]
    %v382 = vld [vmem:[#allocation5 + $0x270] sm:$0xff]
    %v383 = vld [vmem:[#allocation5 + $0x278] sm:$0xff]
    %v384 = vld [vmem:[#allocation5 + $0x280] sm:$0xff]
    %v385 = vld [vmem:[#allocation5 + $0x288] sm:$0xff]
    %v386 = vld [vmem:[#allocation5 + $0x290] sm:$0xff]
    %v387 = vld [vmem:[#allocation5 + $0x298] sm:$0xff]
    %v388 = vld [vmem:[#allocation5 + $0x2a0] sm:$0xff]
    %v389 = vld [vmem:[#allocation5 + $0x2a8] sm:$0xff]
    %v390 = vld [vmem:[#allocation5 + $0x2b0] sm:$0xff]
    %v391 = vld [vmem:[#allocation5 + $0x2b8] sm:$0xff]
    %v392 = vld [vmem:[#allocation5 + $0x2c0] sm:$0xff]
    %v393 = vld [vmem:[#allocation5 + $0x2c8] sm:$0xff]
    %v394 = vld [vmem:[#allocation5 + $0x2d0] sm:$0xff]
    %v395 = vld [vmem:[#allocation5 + $0x2d8] sm:$0xff]
    %v396 = vld [vmem:[#allocation5 + $0x2e0] sm:$0xff]
    %v397 = vld [vmem:[#allocation5 + $0x2e8] sm:$0xff]
    %v398 = vld [vmem:[#allocation5 + $0x2f0] sm:$0xff]
    %v399 = vld [vmem:[#allocation5 + $0x2f8] sm:$0xff]
    %v400 = vld [vmem:[#allocation5 + $0x300] sm:$0xff]
    %v401 = vld [vmem:[#allocation5 + $0x308] sm:$0xff]
    %v402 = vld [vmem:[#allocation5 + $0x310] sm:$0xff]
    %v403 = vld [vmem:[#allocation5 + $0x318] sm:$0xff]
    %v404 = vld [vmem:[#allocation5 + $0x320] sm:$0xff]
    %v405 = vld [vmem:[#allocation5 + $0x328] sm:$0xff]
    %v406 = vld [vmem:[#allocation5 + $0x330] sm:$0xff]
    %v407 = vld [vmem:[#allocation5 + $0x338] sm:$0xff]
    %v408 = vld [vmem:[#allocation5 + $0x340] sm:$0xff]
    %v409 = vld [vmem:[#allocation5 + $0x348] sm:$0xff]
    %v410 = vld [vmem:[#allocation5 + $0x350] sm:$0xff]
    %v411 = vld [vmem:[#allocation5 + $0x358] sm:$0xff]
    %v412 = vld [vmem:[#allocation5 + $0x360] sm:$0xff]
    %v413 = vld [vmem:[#allocation5 + $0x368] sm:$0xff]
    %v414 = vld [vmem:[#allocation5 + $0x370] sm:$0xff]
    %v415 = vld [vmem:[#allocation5 + $0x378] sm:$0xff]
    %v416 = vld [vmem:[#allocation5 + $0x380] sm:$0xff]
    %v417 = vld [vmem:[#allocation5 + $0x388] sm:$0xff]
    %v418 = vld [vmem:[#allocation5 + $0x390] sm:$0xff]
    %v419 = vld [vmem:[#allocation5 + $0x398] sm:$0xff]
    %v420 = vld [vmem:[#allocation5 + $0x3a0] sm:$0xff]
    %v421 = vld [vmem:[#allocation5 + $0x3a8] sm:$0xff]
    %v422 = vld [vmem:[#allocation5 + $0x3b0] sm:$0xff]
    %v423 = vld [vmem:[#allocation5 + $0x3b8] sm:$0xff]
    %v424 = vld [vmem:[#allocation5 + $0x3c0] sm:$0xff]
    %v425 = vld [vmem:[#allocation5 + $0x3c8] sm:$0xff]
    %v426 = vld [vmem:[#allocation5 + $0x3d0] sm:$0xff]
    %v427 = vld [vmem:[#allocation5 + $0x3d8] sm:$0xff]
    %v428 = vld [vmem:[#allocation5 + $0x3e0] sm:$0xff]
    %v429 = vld [vmem:[#allocation5 + $0x3e8] sm:$0xff]
    %v430 = vld [vmem:[#allocation5 + $0x3f0] sm:$0xff]
    %v431 = vld [vmem:[#allocation5 + $0x3f8] sm:$0xff]
    %432 = vmatpush.msra.mxu0 %v334
    %433 = vmatpush.msra.mxu0 %v332
    %434 = vmatpush.msra.mxu0 %v330
    %435 = vmatpush.msra.mxu0 %v328
    %436 = vmatpush.msra.mxu0 %v326
    %437 = vmatpush.msra.mxu0 %v324
    %438 = vmatpush.msra.mxu0 %v322
    %439 = vmatpush.msra.mxu0 %v320
    %440 = vmatpush.msra.mxu0 %v318
    %441 = vmatpush.msra.mxu0 %v316
    %442 = vmatpush.msra.mxu0 %v314
    %443 = vmatpush.msra.mxu0 %v312
    %444 = vmatpush.msra.mxu0 %v310
    %445 = vmatpush.msra.mxu0 %v308
    %446 = vmatpush.msra.mxu0 %v306
    %447 = vmatpush.msra.mxu0 %v304
    %448 = vmatmul.f32.gmra.mxu0 %v176
    %v449 = vpop.f32.mrf.mxu0
    %v450 = vadd.f32 0.0, %v449
    %451 = vmatmul.f32.gmra.mxu0 %v180
    %v452 = vpop.f32.mrf.mxu0
    %v453 = vadd.f32 0.0, %v452
    %454 = vmatmul.f32.gmra.mxu0 %v184
    %v455 = vpop.f32.mrf.mxu0
    %v456 = vadd.f32 0.0, %v455
    %457 = vmatmul.f32.gmra.mxu0 %v188
    %v458 = vpop.f32.mrf.mxu0
    %v459 = vadd.f32 0.0, %v458
    %460 = vmatmul.f32.gmra.mxu0 %v192
    %v461 = vpop.f32.mrf.mxu0
    %v462 = vadd.f32 0.0, %v461
    %463 = vmatmul.f32.gmra.mxu0 %v196
    %v464 = vpop.f32.mrf.mxu0
    %v465 = vadd.f32 0.0, %v464
    %466 = vmatmul.f32.gmra.mxu0 %v200
    %v467 = vpop.f32.mrf.mxu0
    %v468 = vadd.f32 0.0, %v467
    %469 = vmatmul.f32.gmra.mxu0 %v204
    %v470 = vpop.f32.mrf.mxu0
    %v471 = vadd.f32 0.0, %v470
    %472 = vmatmul.f32.gmra.mxu0 %v208
    %v473 = vpop.f32.mrf.mxu0
    %v474 = vadd.f32 0.0, %v473
    %475 = vmatmul.f32.gmra.mxu0 %v212
    %v476 = vpop.f32.mrf.mxu0
    %v477 = vadd.f32 0.0, %v476
    %478 = vmatmul.f32.gmra.mxu0 %v216
    %v479 = vpop.f32.mrf.mxu0
    %v480 = vadd.f32 0.0, %v479
    %481 = vmatmul.f32.gmra.mxu0 %v220
    %v482 = vpop.f32.mrf.mxu0
    %v483 = vadd.f32 0.0, %v482
    %484 = vmatmul.f32.gmra.mxu0 %v224
    %v485 = vpop.f32.mrf.mxu0
    %v486 = vadd.f32 0.0, %v485
    %487 = vmatmul.f32.gmra.mxu0 %v228
    %v488 = vpop.f32.mrf.mxu0
    %v489 = vadd.f32 0.0, %v488
    %490 = vmatmul.f32.gmra.mxu0 %v232
    %v491 = vpop.f32.mrf.mxu0
    %v492 = vadd.f32 0.0, %v491
    %493 = vmatmul.f32.gmra.mxu0 %v236
    %v494 = vpop.f32.mrf.mxu0
    %v495 = vadd.f32 0.0, %v494
    %496 = vmatmul.f32.gmra.mxu0 %v240
    %v497 = vpop.f32.mrf.mxu0
    %v498 = vadd.f32 0.0, %v497
    %499 = vmatmul.f32.gmra.mxu0 %v244
    %v500 = vpop.f32.mrf.mxu0
    %v501 = vadd.f32 0.0, %v500
    %502 = vmatmul.f32.gmra.mxu0 %v248
    %v503 = vpop.f32.mrf.mxu0
    %v504 = vadd.f32 0.0, %v503
    %505 = vmatmul.f32.gmra.mxu0 %v252
    %v506 = vpop.f32.mrf.mxu0
    %v507 = vadd.f32 0.0, %v506
    %508 = vmatmul.f32.gmra.mxu0 %v256
    %v509 = vpop.f32.mrf.mxu0
    %v510 = vadd.f32 0.0, %v509
    %511 = vmatmul.f32.gmra.mxu0 %v260
    %v512 = vpop.f32.mrf.mxu0
    %v513 = vadd.f32 0.0, %v512
    %514 = vmatmul.f32.gmra.mxu0 %v264
    %v515 = vpop.f32.mrf.mxu0
    %v516 = vadd.f32 0.0, %v515
    %517 = vmatmul.f32.gmra.mxu0 %v268
    %v518 = vpop.f32.mrf.mxu0
    %v519 = vadd.f32 0.0, %v518
    %520 = vmatmul.f32.gmra.mxu0 %v272
    %v521 = vpop.f32.mrf.mxu0
    %v522 = vadd.f32 0.0, %v521
    %523 = vmatmul.f32.gmra.mxu0 %v276
    %v524 = vpop.f32.mrf.mxu0
    %v525 = vadd.f32 0.0, %v524
    %526 = vmatmul.f32.gmra.mxu0 %v280
    %v527 = vpop.f32.mrf.mxu0
    %v528 = vadd.f32 0.0, %v527
    %529 = vmatmul.f32.gmra.mxu0 %v284
    %v530 = vpop.f32.mrf.mxu0
    %v531 = vadd.f32 0.0, %v530
    %532 = vmatmul.f32.gmra.mxu0 %v288
    %v533 = vpop.f32.mrf.mxu0
    %v534 = vadd.f32 0.0, %v533
    %535 = vmatmul.f32.gmra.mxu0 %v292
    %v536 = vpop.f32.mrf.mxu0
    %v537 = vadd.f32 0.0, %v536
    %538 = vmatmul.f32.gmra.mxu0 %v296
    %v539 = vpop.f32.mrf.mxu0
    %v540 = vadd.f32 0.0, %v539
    %541 = vmatmul.f32.gmra.mxu0 %v300
    %v542 = vpop.f32.mrf.mxu0
    %v543 = vadd.f32 0.0, %v542
    %544 = vdwg.mxu0
    %545 = vmatpush.msra.mxu0 %v366
    %546 = vmatpush.msra.mxu0 %v364
    %547 = vmatpush.msra.mxu0 %v362
    %548 = vmatpush.msra.mxu0 %v360
    %549 = vmatpush.msra.mxu0 %v358
    %550 = vmatpush.msra.mxu0 %v356
    %551 = vmatpush.msra.mxu0 %v354
    %552 = vmatpush.msra.mxu0 %v352
    %553 = vmatpush.msra.mxu0 %v350
    %554 = vmatpush.msra.mxu0 %v348
    %555 = vmatpush.msra.mxu0 %v346
    %556 = vmatpush.msra.mxu0 %v344
    %557 = vmatpush.msra.mxu0 %v342
    %558 = vmatpush.msra.mxu0 %v340
    %559 = vmatpush.msra.mxu0 %v338
    %560 = vmatpush.msra.mxu0 %v336
    %561 = vmatmul.f32.gmra.mxu0 %v177
    %v562 = vpop.f32.mrf.mxu0
    %v563 = vadd.f32 %v450, %v562
    %564 = vmatmul.f32.gmra.mxu0 %v181
    %v565 = vpop.f32.mrf.mxu0
    %v566 = vadd.f32 %v453, %v565
    %567 = vmatmul.f32.gmra.mxu0 %v185
    %v568 = vpop.f32.mrf.mxu0
    %v569 = vadd.f32 %v456, %v568
    %570 = vmatmul.f32.gmra.mxu0 %v189
    %v571 = vpop.f32.mrf.mxu0
    %v572 = vadd.f32 %v459, %v571
    %573 = vmatmul.f32.gmra.mxu0 %v193
    %v574 = vpop.f32.mrf.mxu0
    %v575 = vadd.f32 %v462, %v574
    %576 = vmatmul.f32.gmra.mxu0 %v197
    %v577 = vpop.f32.mrf.mxu0
    %v578 = vadd.f32 %v465, %v577
    %579 = vmatmul.f32.gmra.mxu0 %v201
    %v580 = vpop.f32.mrf.mxu0
    %v581 = vadd.f32 %v468, %v580
    %582 = vmatmul.f32.gmra.mxu0 %v205
    %v583 = vpop.f32.mrf.mxu0
    %v584 = vadd.f32 %v471, %v583
    %585 = vmatmul.f32.gmra.mxu0 %v209
    %v586 = vpop.f32.mrf.mxu0
    %v587 = vadd.f32 %v474, %v586
    %588 = vmatmul.f32.gmra.mxu0 %v213
    %v589 = vpop.f32.mrf.mxu0
    %v590 = vadd.f32 %v477, %v589
    %591 = vmatmul.f32.gmra.mxu0 %v217
    %v592 = vpop.f32.mrf.mxu0
    %v593 = vadd.f32 %v480, %v592
    %594 = vmatmul.f32.gmra.mxu0 %v221
    %v595 = vpop.f32.mrf.mxu0
    %v596 = vadd.f32 %v483, %v595
    %597 = vmatmul.f32.gmra.mxu0 %v225
    %v598 = vpop.f32.mrf.mxu0
    %v599 = vadd.f32 %v486, %v598
    %600 = vmatmul.f32.gmra.mxu0 %v229
    %v601 = vpop.f32.mrf.mxu0
    %v602 = vadd.f32 %v489, %v601
    %603 = vmatmul.f32.gmra.mxu0 %v233
    %v604 = vpop.f32.mrf.mxu0
    %v605 = vadd.f32 %v492, %v604
    %606 = vmatmul.f32.gmra.mxu0 %v237
    %v607 = vpop.f32.mrf.mxu0
    %v608 = vadd.f32 %v495, %v607
    %609 = vmatmul.f32.gmra.mxu0 %v241
    %v610 = vpop.f32.mrf.mxu0
    %v611 = vadd.f32 %v498, %v610
    %612 = vmatmul.f32.gmra.mxu0 %v245
    %v613 = vpop.f32.mrf.mxu0
    %v614 = vadd.f32 %v501, %v613
    %615 = vmatmul.f32.gmra.mxu0 %v249
    %v616 = vpop.f32.mrf.mxu0
    %v617 = vadd.f32 %v504, %v616
    %618 = vmatmul.f32.gmra.mxu0 %v253
    %v619 = vpop.f32.mrf.mxu0
    %v620 = vadd.f32 %v507, %v619
    %621 = vmatmul.f32.gmra.mxu0 %v257
    %v622 = vpop.f32.mrf.mxu0
    %v623 = vadd.f32 %v510, %v622
    %624 = vmatmul.f32.gmra.mxu0 %v261
    %v625 = vpop.f32.mrf.mxu0
    %v626 = vadd.f32 %v513, %v625
    %627 = vmatmul.f32.gmra.mxu0 %v265
    %v628 = vpop.f32.mrf.mxu0
    %v629 = vadd.f32 %v516, %v628
    %630 = vmatmul.f32.gmra.mxu0 %v269
    %v631 = vpop.f32.mrf.mxu0
    %v632 = vadd.f32 %v519, %v631
    %633 = vmatmul.f32.gmra.mxu0 %v273
    %v634 = vpop.f32.mrf.mxu0
    %v635 = vadd.f32 %v522, %v634
    %636 = vmatmul.f32.gmra.mxu0 %v277
    %v637 = vpop.f32.mrf.mxu0
    %v638 = vadd.f32 %v525, %v637
    %639 = vmatmul.f32.gmra.mxu0 %v281
    %v640 = vpop.f32.mrf.mxu0
    %v641 = vadd.f32 %v528, %v640
    %642 = vmatmul.f32.gmra.mxu0 %v285
    %v643 = vpop.f32.mrf.mxu0
    %v644 = vadd.f32 %v531, %v643
    %645 = vmatmul.f32.gmra.mxu0 %v289
    %v646 = vpop.f32.mrf.mxu0
    %v647 = vadd.f32 %v534, %v646
    %648 = vmatmul.f32.gmra.mxu0 %v293
    %v649 = vpop.f32.mrf.mxu0
    %v650 = vadd.f32 %v537, %v649
    %651 = vmatmul.f32.gmra.mxu0 %v297
    %v652 = vpop.f32.mrf.mxu0
    %v653 = vadd.f32 %v540, %v652
    %654 = vmatmul.f32.gmra.mxu0 %v301
    %v655 = vpop.f32.mrf.mxu0
    %v656 = vadd.f32 %v543, %v655
    %657 = vdwg.mxu0
    %658 = vmatpush.msra.mxu0 %v398
    %659 = vmatpush.msra.mxu0 %v396
    %660 = vmatpush.msra.mxu0 %v394
    %661 = vmatpush.msra.mxu0 %v392
    %662 = vmatpush.msra.mxu0 %v390
    %663 = vmatpush.msra.mxu0 %v388
    %664 = vmatpush.msra.mxu0 %v386
    %665 = vmatpush.msra.mxu0 %v384
    %666 = vmatpush.msra.mxu0 %v382
    %667 = vmatpush.msra.mxu0 %v380
    %668 = vmatpush.msra.mxu0 %v378
    %669 = vmatpush.msra.mxu0 %v376
    %670 = vmatpush.msra.mxu0 %v374
    %671 = vmatpush.msra.mxu0 %v372
    %672 = vmatpush.msra.mxu0 %v370
    %673 = vmatpush.msra.mxu0 %v368
    %674 = vmatmul.f32.gmra.mxu0 %v178
    %v675 = vpop.f32.mrf.mxu0
    %v676 = vadd.f32 %v563, %v675
    %677 = vmatmul.f32.gmra.mxu0 %v182
    %v678 = vpop.f32.mrf.mxu0
    %v679 = vadd.f32 %v566, %v678
    %680 = vmatmul.f32.gmra.mxu0 %v186
    %v681 = vpop.f32.mrf.mxu0
    %v682 = vadd.f32 %v569, %v681
    %683 = vmatmul.f32.gmra.mxu0 %v190
    %v684 = vpop.f32.mrf.mxu0
    %v685 = vadd.f32 %v572, %v684
    %686 = vmatmul.f32.gmra.mxu0 %v194
    %v687 = vpop.f32.mrf.mxu0
    %v688 = vadd.f32 %v575, %v687
    %689 = vmatmul.f32.gmra.mxu0 %v198
    %v690 = vpop.f32.mrf.mxu0
    %v691 = vadd.f32 %v578, %v690
    %692 = vmatmul.f32.gmra.mxu0 %v202
    %v693 = vpop.f32.mrf.mxu0
    %v694 = vadd.f32 %v581, %v693
    %695 = vmatmul.f32.gmra.mxu0 %v206
    %v696 = vpop.f32.mrf.mxu0
    %v697 = vadd.f32 %v584, %v696
    %698 = vmatmul.f32.gmra.mxu0 %v210
    %v699 = vpop.f32.mrf.mxu0
    %v700 = vadd.f32 %v587, %v699
    %701 = vmatmul.f32.gmra.mxu0 %v214
    %v702 = vpop.f32.mrf.mxu0
    %v703 = vadd.f32 %v590, %v702
    %704 = vmatmul.f32.gmra.mxu0 %v218
    %v705 = vpop.f32.mrf.mxu0
    %v706 = vadd.f32 %v593, %v705
    %707 = vmatmul.f32.gmra.mxu0 %v222
    %v708 = vpop.f32.mrf.mxu0
    %v709 = vadd.f32 %v596, %v708
    %710 = vmatmul.f32.gmra.mxu0 %v226
    %v711 = vpop.f32.mrf.mxu0
    %v712 = vadd.f32 %v599, %v711
    %713 = vmatmul.f32.gmra.mxu0 %v230
    %v714 = vpop.f32.mrf.mxu0
    %v715 = vadd.f32 %v602, %v714
    %716 = vmatmul.f32.gmra.mxu0 %v234
    %v717 = vpop.f32.mrf.mxu0
    %v718 = vadd.f32 %v605, %v717
    %719 = vmatmul.f32.gmra.mxu0 %v238
    %v720 = vpop.f32.mrf.mxu0
    %v721 = vadd.f32 %v608, %v720
    %722 = vmatmul.f32.gmra.mxu0 %v242
    %v723 = vpop.f32.mrf.mxu0
    %v724 = vadd.f32 %v611, %v723
    %725 = vmatmul.f32.gmra.mxu0 %v246
    %v726 = vpop.f32.mrf.mxu0
    %v727 = vadd.f32 %v614, %v726
    %728 = vmatmul.f32.gmra.mxu0 %v250
    %v729 = vpop.f32.mrf.mxu0
    %v730 = vadd.f32 %v617, %v729
    %731 = vmatmul.f32.gmra.mxu0 %v254
    %v732 = vpop.f32.mrf.mxu0
    %v733 = vadd.f32 %v620, %v732
    %734 = vmatmul.f32.gmra.mxu0 %v258
    %v735 = vpop.f32.mrf.mxu0
    %v736 = vadd.f32 %v623, %v735
    %737 = vmatmul.f32.gmra.mxu0 %v262
    %v738 = vpop.f32.mrf.mxu0
    %v739 = vadd.f32 %v626, %v738
    %740 = vmatmul.f32.gmra.mxu0 %v266
    %v741 = vpop.f32.mrf.mxu0
    %v742 = vadd.f32 %v629, %v741
    %743 = vmatmul.f32.gmra.mxu0 %v270
    %v744 = vpop.f32.mrf.mxu0
    %v745 = vadd.f32 %v632, %v744
    %746 = vmatmul.f32.gmra.mxu0 %v274
    %v747 = vpop.f32.mrf.mxu0
    %v748 = vadd.f32 %v635, %v747
    %749 = vmatmul.f32.gmra.mxu0 %v278
    %v750 = vpop.f32.mrf.mxu0
    %v751 = vadd.f32 %v638, %v750
    %752 = vmatmul.f32.gmra.mxu0 %v282
    %v753 = vpop.f32.mrf.mxu0
    %v754 = vadd.f32 %v641, %v753
    %755 = vmatmul.f32.gmra.mxu0 %v286
    %v756 = vpop.f32.mrf.mxu0
    %v757 = vadd.f32 %v644, %v756
    %758 = vmatmul.f32.gmra.mxu0 %v290
    %v759 = vpop.f32.mrf.mxu0
    %v760 = vadd.f32 %v647, %v759
    %761 = vmatmul.f32.gmra.mxu0 %v294
    %v762 = vpop.f32.mrf.mxu0
    %v763 = vadd.f32 %v650, %v762
    %764 = vmatmul.f32.gmra.mxu0 %v298
    %v765 = vpop.f32.mrf.mxu0
    %v766 = vadd.f32 %v653, %v765
    %767 = vmatmul.f32.gmra.mxu0 %v302
    %v768 = vpop.f32.mrf.mxu0
    %v769 = vadd.f32 %v656, %v768
    %770 = vdwg.mxu0
    %771 = vmatpush.msra.mxu0 %v430
    %772 = vmatpush.msra.mxu0 %v428
    %773 = vmatpush.msra.mxu0 %v426
    %774 = vmatpush.msra.mxu0 %v424
    %775 = vmatpush.msra.mxu0 %v422
    %776 = vmatpush.msra.mxu0 %v420
    %777 = vmatpush.msra.mxu0 %v418
    %778 = vmatpush.msra.mxu0 %v416
    %779 = vmatpush.msra.mxu0 %v414
    %780 = vmatpush.msra.mxu0 %v412
    %781 = vmatpush.msra.mxu0 %v410
    %782 = vmatpush.msra.mxu0 %v408
    %783 = vmatpush.msra.mxu0 %v406
    %784 = vmatpush.msra.mxu0 %v404
    %785 = vmatpush.msra.mxu0 %v402
    %786 = vmatpush.msra.mxu0 %v400
    %787 = vmatmul.f32.gmra.mxu0 %v179
    %v788 = vpop.f32.mrf.mxu0
    %v789 = vadd.f32 %v676, %v788
    %790 = vmatmul.f32.gmra.mxu0 %v183
    %v791 = vpop.f32.mrf.mxu0
    %v792 = vadd.f32 %v679, %v791
    %793 = vmatmul.f32.gmra.mxu0 %v187
    %v794 = vpop.f32.mrf.mxu0
    %v795 = vadd.f32 %v682, %v794
    %796 = vmatmul.f32.gmra.mxu0 %v191
    %v797 = vpop.f32.mrf.mxu0
    %v798 = vadd.f32 %v685, %v797
    %799 = vmatmul.f32.gmra.mxu0 %v195
    %v800 = vpop.f32.mrf.mxu0
    %v801 = vadd.f32 %v688, %v800
    %802 = vmatmul.f32.gmra.mxu0 %v199
    %v803 = vpop.f32.mrf.mxu0
    %v804 = vadd.f32 %v691, %v803
    %805 = vmatmul.f32.gmra.mxu0 %v203
    %v806 = vpop.f32.mrf.mxu0
    %v807 = vadd.f32 %v694, %v806
    %808 = vmatmul.f32.gmra.mxu0 %v207
    %v809 = vpop.f32.mrf.mxu0
    %v810 = vadd.f32 %v697, %v809
    %811 = vmatmul.f32.gmra.mxu0 %v211
    %v812 = vpop.f32.mrf.mxu0
    %v813 = vadd.f32 %v700, %v812
    %814 = vmatmul.f32.gmra.mxu0 %v215
    %v815 = vpop.f32.mrf.mxu0
    %v816 = vadd.f32 %v703, %v815
    %817 = vmatmul.f32.gmra.mxu0 %v219
    %v818 = vpop.f32.mrf.mxu0
    %v819 = vadd.f32 %v706, %v818
    %820 = vmatmul.f32.gmra.mxu0 %v223
    %v821 = vpop.f32.mrf.mxu0
    %v822 = vadd.f32 %v709, %v821
    %823 = vmatmul.f32.gmra.mxu0 %v227
    %v824 = vpop.f32.mrf.mxu0
    %v825 = vadd.f32 %v712, %v824
    %826 = vmatmul.f32.gmra.mxu0 %v231
    %v827 = vpop.f32.mrf.mxu0
    %v828 = vadd.f32 %v715, %v827
    %829 = vmatmul.f32.gmra.mxu0 %v235
    %v830 = vpop.f32.mrf.mxu0
    %v831 = vadd.f32 %v718, %v830
    %832 = vmatmul.f32.gmra.mxu0 %v239
    %v833 = vpop.f32.mrf.mxu0
    %v834 = vadd.f32 %v721, %v833
    %835 = vmatmul.f32.gmra.mxu0 %v243
    %v836 = vpop.f32.mrf.mxu0
    %v837 = vadd.f32 %v724, %v836
    %838 = vmatmul.f32.gmra.mxu0 %v247
    %v839 = vpop.f32.mrf.mxu0
    %v840 = vadd.f32 %v727, %v839
    %841 = vmatmul.f32.gmra.mxu0 %v251
    %v842 = vpop.f32.mrf.mxu0
    %v843 = vadd.f32 %v730, %v842
    %844 = vmatmul.f32.gmra.mxu0 %v255
    %v845 = vpop.f32.mrf.mxu0
    %v846 = vadd.f32 %v733, %v845
    %847 = vmatmul.f32.gmra.mxu0 %v259
    %v848 = vpop.f32.mrf.mxu0
    %v849 = vadd.f32 %v736, %v848
    %850 = vmatmul.f32.gmra.mxu0 %v263
    %v851 = vpop.f32.mrf.mxu0
    %v852 = vadd.f32 %v739, %v851
    %853 = vmatmul.f32.gmra.mxu0 %v267
    %v854 = vpop.f32.mrf.mxu0
    %v855 = vadd.f32 %v742, %v854
    %856 = vmatmul.f32.gmra.mxu0 %v271
    %v857 = vpop.f32.mrf.mxu0
    %v858 = vadd.f32 %v745, %v857
    %859 = vmatmul.f32.gmra.mxu0 %v275
    %v860 = vpop.f32.mrf.mxu0
    %v861 = vadd.f32 %v748, %v860
    %862 = vmatmul.f32.gmra.mxu0 %v279
    %v863 = vpop.f32.mrf.mxu0
    %v864 = vadd.f32 %v751, %v863
    %865 = vmatmul.f32.gmra.mxu0 %v283
    %v866 = vpop.f32.mrf.mxu0
    %v867 = vadd.f32 %v754, %v866
    %868 = vmatmul.f32.gmra.mxu0 %v287
    %v869 = vpop.f32.mrf.mxu0
    %v870 = vadd.f32 %v757, %v869
    %871 = vmatmul.f32.gmra.mxu0 %v291
    %v872 = vpop.f32.mrf.mxu0
    %v873 = vadd.f32 %v760, %v872
    %874 = vmatmul.f32.gmra.mxu0 %v295
    %v875 = vpop.f32.mrf.mxu0
    %v876 = vadd.f32 %v763, %v875
    %877 = vmatmul.f32.gmra.mxu0 %v299
    %v878 = vpop.f32.mrf.mxu0
    %v879 = vadd.f32 %v766, %v878
    %880 = vmatmul.f32.gmra.mxu0 %v303
    %v881 = vpop.f32.mrf.mxu0
    %v882 = vadd.f32 %v769, %v881
    %883 = vdwg.mxu0
    %884 = vmatpush.msra.mxu0 %v335
    %885 = vmatpush.msra.mxu0 %v333
    %886 = vmatpush.msra.mxu0 %v331
    %887 = vmatpush.msra.mxu0 %v329
    %888 = vmatpush.msra.mxu0 %v327
    %889 = vmatpush.msra.mxu0 %v325
    %890 = vmatpush.msra.mxu0 %v323
    %891 = vmatpush.msra.mxu0 %v321
    %892 = vmatpush.msra.mxu0 %v319
    %893 = vmatpush.msra.mxu0 %v317
    %894 = vmatpush.msra.mxu0 %v315
    %895 = vmatpush.msra.mxu0 %v313
    %896 = vmatpush.msra.mxu0 %v311
    %897 = vmatpush.msra.mxu0 %v309
    %898 = vmatpush.msra.mxu0 %v307
    %899 = vmatpush.msra.mxu0 %v305
    %900 = vmatmul.f32.gmra.mxu0 %v176
    %v901 = vpop.f32.mrf.mxu0
    %v902 = vadd.f32 0.0, %v901
    %903 = vmatmul.f32.gmra.mxu0 %v180
    %v904 = vpop.f32.mrf.mxu0
    %v905 = vadd.f32 0.0, %v904
    %906 = vmatmul.f32.gmra.mxu0 %v184
    %v907 = vpop.f32.mrf.mxu0
    %v908 = vadd.f32 0.0, %v907
    %909 = vmatmul.f32.gmra.mxu0 %v188
    %v910 = vpop.f32.mrf.mxu0
    %v911 = vadd.f32 0.0, %v910
    %912 = vmatmul.f32.gmra.mxu0 %v192
    %v913 = vpop.f32.mrf.mxu0
    %v914 = vadd.f32 0.0, %v913
    %915 = vmatmul.f32.gmra.mxu0 %v196
    %v916 = vpop.f32.mrf.mxu0
    %v917 = vadd.f32 0.0, %v916
    %918 = vmatmul.f32.gmra.mxu0 %v200
    %v919 = vpop.f32.mrf.mxu0
    %v920 = vadd.f32 0.0, %v919
    %921 = vmatmul.f32.gmra.mxu0 %v204
    %v922 = vpop.f32.mrf.mxu0
    %v923 = vadd.f32 0.0, %v922
    %924 = vmatmul.f32.gmra.mxu0 %v208
    %v925 = vpop.f32.mrf.mxu0
    %v926 = vadd.f32 0.0, %v925
    %927 = vmatmul.f32.gmra.mxu0 %v212
    %v928 = vpop.f32.mrf.mxu0
    %v929 = vadd.f32 0.0, %v928
    %930 = vmatmul.f32.gmra.mxu0 %v216
    %v931 = vpop.f32.mrf.mxu0
    %v932 = vadd.f32 0.0, %v931
    %933 = vmatmul.f32.gmra.mxu0 %v220
    %v934 = vpop.f32.mrf.mxu0
    %v935 = vadd.f32 0.0, %v934
    %936 = vmatmul.f32.gmra.mxu0 %v224
    %v937 = vpop.f32.mrf.mxu0
    %v938 = vadd.f32 0.0, %v937
    %939 = vmatmul.f32.gmra.mxu0 %v228
    %v940 = vpop.f32.mrf.mxu0
    %v941 = vadd.f32 0.0, %v940
    %942 = vmatmul.f32.gmra.mxu0 %v232
    %v943 = vpop.f32.mrf.mxu0
    %v944 = vadd.f32 0.0, %v943
    %945 = vmatmul.f32.gmra.mxu0 %v236
    %v946 = vpop.f32.mrf.mxu0
    %v947 = vadd.f32 0.0, %v946
    %948 = vmatmul.f32.gmra.mxu0 %v240
    %v949 = vpop.f32.mrf.mxu0
    %v950 = vadd.f32 0.0, %v949
    %951 = vmatmul.f32.gmra.mxu0 %v244
    %v952 = vpop.f32.mrf.mxu0
    %v953 = vadd.f32 0.0, %v952
    %954 = vmatmul.f32.gmra.mxu0 %v248
    %v955 = vpop.f32.mrf.mxu0
    %v956 = vadd.f32 0.0, %v955
    %957 = vmatmul.f32.gmra.mxu0 %v252
    %v958 = vpop.f32.mrf.mxu0
    %v959 = vadd.f32 0.0, %v958
    %960 = vmatmul.f32.gmra.mxu0 %v256
    %v961 = vpop.f32.mrf.mxu0
    %v962 = vadd.f32 0.0, %v961
    %963 = vmatmul.f32.gmra.mxu0 %v260
    %v964 = vpop.f32.mrf.mxu0
    %v965 = vadd.f32 0.0, %v964
    %966 = vmatmul.f32.gmra.mxu0 %v264
    %v967 = vpop.f32.mrf.mxu0
    %v968 = vadd.f32 0.0, %v967
    %969 = vmatmul.f32.gmra.mxu0 %v268
    %v970 = vpop.f32.mrf.mxu0
    %v971 = vadd.f32 0.0, %v970
    %972 = vmatmul.f32.gmra.mxu0 %v272
    %v973 = vpop.f32.mrf.mxu0
    %v974 = vadd.f32 0.0, %v973
    %975 = vmatmul.f32.gmra.mxu0 %v276
    %v976 = vpop.f32.mrf.mxu0
    %v977 = vadd.f32 0.0, %v976
    %978 = vmatmul.f32.gmra.mxu0 %v280
    %v979 = vpop.f32.mrf.mxu0
    %v980 = vadd.f32 0.0, %v979
    %981 = vmatmul.f32.gmra.mxu0 %v284
    %v982 = vpop.f32.mrf.mxu0
    %v983 = vadd.f32 0.0, %v982
    %984 = vmatmul.f32.gmra.mxu0 %v288
    %v985 = vpop.f32.mrf.mxu0
    %v986 = vadd.f32 0.0, %v985
    %987 = vmatmul.f32.gmra.mxu0 %v292
    %v988 = vpop.f32.mrf.mxu0
    %v989 = vadd.f32 0.0, %v988
    %990 = vmatmul.f32.gmra.mxu0 %v296
    %v991 = vpop.f32.mrf.mxu0
    %v992 = vadd.f32 0.0, %v991
    %993 = vmatmul.f32.gmra.mxu0 %v300
    %v994 = vpop.f32.mrf.mxu0
    %v995 = vadd.f32 0.0, %v994
    %996 = vdwg.mxu0
    %997 = vmatpush.msra.mxu0 %v367
    %998 = vmatpush.msra.mxu0 %v365
    %999 = vmatpush.msra.mxu0 %v363
    %1000 = vmatpush.msra.mxu0 %v361
    %1001 = vmatpush.msra.mxu0 %v359
    %1002 = vmatpush.msra.mxu0 %v357
    %1003 = vmatpush.msra.mxu0 %v355
    %1004 = vmatpush.msra.mxu0 %v353
    %1005 = vmatpush.msra.mxu0 %v351
    %1006 = vmatpush.msra.mxu0 %v349
    %1007 = vmatpush.msra.mxu0 %v347
    %1008 = vmatpush.msra.mxu0 %v345
    %1009 = vmatpush.msra.mxu0 %v343
    %1010 = vmatpush.msra.mxu0 %v341
    %1011 = vmatpush.msra.mxu0 %v339
    %1012 = vmatpush.msra.mxu0 %v337
    %1013 = vmatmul.f32.gmra.mxu0 %v177
    %v1014 = vpop.f32.mrf.mxu0
    %v1015 = vadd.f32 %v902, %v1014
    %1016 = vmatmul.f32.gmra.mxu0 %v181
    %v1017 = vpop.f32.mrf.mxu0
    %v1018 = vadd.f32 %v905, %v1017
    %1019 = vmatmul.f32.gmra.mxu0 %v185
    %v1020 = vpop.f32.mrf.mxu0
    %v1021 = vadd.f32 %v908, %v1020
    %1022 = vmatmul.f32.gmra.mxu0 %v189
    %v1023 = vpop.f32.mrf.mxu0
    %v1024 = vadd.f32 %v911, %v1023
    %1025 = vmatmul.f32.gmra.mxu0 %v193
    %v1026 = vpop.f32.mrf.mxu0
    %v1027 = vadd.f32 %v914, %v1026
    %1028 = vmatmul.f32.gmra.mxu0 %v197
    %v1029 = vpop.f32.mrf.mxu0
    %v1030 = vadd.f32 %v917, %v1029
    %1031 = vmatmul.f32.gmra.mxu0 %v201
    %v1032 = vpop.f32.mrf.mxu0
    %v1033 = vadd.f32 %v920, %v1032
    %1034 = vmatmul.f32.gmra.mxu0 %v205
    %v1035 = vpop.f32.mrf.mxu0
    %v1036 = vadd.f32 %v923, %v1035
    %1037 = vmatmul.f32.gmra.mxu0 %v209
    %v1038 = vpop.f32.mrf.mxu0
    %v1039 = vadd.f32 %v926, %v1038
    %1040 = vmatmul.f32.gmra.mxu0 %v213
    %v1041 = vpop.f32.mrf.mxu0
    %v1042 = vadd.f32 %v929, %v1041
    %1043 = vmatmul.f32.gmra.mxu0 %v217
    %v1044 = vpop.f32.mrf.mxu0
    %v1045 = vadd.f32 %v932, %v1044
    %1046 = vmatmul.f32.gmra.mxu0 %v221
    %v1047 = vpop.f32.mrf.mxu0
    %v1048 = vadd.f32 %v935, %v1047
    %1049 = vmatmul.f32.gmra.mxu0 %v225
    %v1050 = vpop.f32.mrf.mxu0
    %v1051 = vadd.f32 %v938, %v1050
    %1052 = vmatmul.f32.gmra.mxu0 %v229
    %v1053 = vpop.f32.mrf.mxu0
    %v1054 = vadd.f32 %v941, %v1053
    %1055 = vmatmul.f32.gmra.mxu0 %v233
    %v1056 = vpop.f32.mrf.mxu0
    %v1057 = vadd.f32 %v944, %v1056
    %1058 = vmatmul.f32.gmra.mxu0 %v237
    %v1059 = vpop.f32.mrf.mxu0
    %v1060 = vadd.f32 %v947, %v1059
    %1061 = vmatmul.f32.gmra.mxu0 %v241
    %v1062 = vpop.f32.mrf.mxu0
    %v1063 = vadd.f32 %v950, %v1062
    %1064 = vmatmul.f32.gmra.mxu0 %v245
    %v1065 = vpop.f32.mrf.mxu0
    %v1066 = vadd.f32 %v953, %v1065
    %1067 = vmatmul.f32.gmra.mxu0 %v249
    %v1068 = vpop.f32.mrf.mxu0
    %v1069 = vadd.f32 %v956, %v1068
    %1070 = vmatmul.f32.gmra.mxu0 %v253
    %v1071 = vpop.f32.mrf.mxu0
    %v1072 = vadd.f32 %v959, %v1071
    %1073 = vmatmul.f32.gmra.mxu0 %v257
    %v1074 = vpop.f32.mrf.mxu0
    %v1075 = vadd.f32 %v962, %v1074
    %1076 = vmatmul.f32.gmra.mxu0 %v261
    %v1077 = vpop.f32.mrf.mxu0
    %v1078 = vadd.f32 %v965, %v1077
    %1079 = vmatmul.f32.gmra.mxu0 %v265
    %v1080 = vpop.f32.mrf.mxu0
    %v1081 = vadd.f32 %v968, %v1080
    %1082 = vmatmul.f32.gmra.mxu0 %v269
    %v1083 = vpop.f32.mrf.mxu0
    %v1084 = vadd.f32 %v971, %v1083
    %1085 = vmatmul.f32.gmra.mxu0 %v273
    %v1086 = vpop.f32.mrf.mxu0
    %v1087 = vadd.f32 %v974, %v1086
    %1088 = vmatmul.f32.gmra.mxu0 %v277
    %v1089 = vpop.f32.mrf.mxu0
    %v1090 = vadd.f32 %v977, %v1089
    %1091 = vmatmul.f32.gmra.mxu0 %v281
    %v1092 = vpop.f32.mrf.mxu0
    %v1093 = vadd.f32 %v980, %v1092
    %1094 = vmatmul.f32.gmra.mxu0 %v285
    %v1095 = vpop.f32.mrf.mxu0
    %v1096 = vadd.f32 %v983, %v1095
    %1097 = vmatmul.f32.gmra.mxu0 %v289
    %v1098 = vpop.f32.mrf.mxu0
    %v1099 = vadd.f32 %v986, %v1098
    %1100 = vmatmul.f32.gmra.mxu0 %v293
    %v1101 = vpop.f32.mrf.mxu0
    %v1102 = vadd.f32 %v989, %v1101
    %1103 = vmatmul.f32.gmra.mxu0 %v297
    %v1104 = vpop.f32.mrf.mxu0
    %v1105 = vadd.f32 %v992, %v1104
    %1106 = vmatmul.f32.gmra.mxu0 %v301
    %v1107 = vpop.f32.mrf.mxu0
    %v1108 = vadd.f32 %v995, %v1107
    %1109 = vdwg.mxu0
    %1110 = vmatpush.msra.mxu0 %v399
    %1111 = vmatpush.msra.mxu0 %v397
    %1112 = vmatpush.msra.mxu0 %v395
    %1113 = vmatpush.msra.mxu0 %v393
    %1114 = vmatpush.msra.mxu0 %v391
    %1115 = vmatpush.msra.mxu0 %v389
    %1116 = vmatpush.msra.mxu0 %v387
    %1117 = vmatpush.msra.mxu0 %v385
    %1118 = vmatpush.msra.mxu0 %v383
    %1119 = vmatpush.msra.mxu0 %v381
    %1120 = vmatpush.msra.mxu0 %v379
    %1121 = vmatpush.msra.mxu0 %v377
    %1122 = vmatpush.msra.mxu0 %v375
    %1123 = vmatpush.msra.mxu0 %v373
    %1124 = vmatpush.msra.mxu0 %v371
    %1125 = vmatpush.msra.mxu0 %v369
    %1126 = vmatmul.f32.gmra.mxu0 %v178
    %v1127 = vpop.f32.mrf.mxu0
    %v1128 = vadd.f32 %v1015, %v1127
    %1129 = vmatmul.f32.gmra.mxu0 %v182
    %v1130 = vpop.f32.mrf.mxu0
    %v1131 = vadd.f32 %v1018, %v1130
    %1132 = vmatmul.f32.gmra.mxu0 %v186
    %v1133 = vpop.f32.mrf.mxu0
    %v1134 = vadd.f32 %v1021, %v1133
    %1135 = vmatmul.f32.gmra.mxu0 %v190
    %v1136 = vpop.f32.mrf.mxu0
    %v1137 = vadd.f32 %v1024, %v1136
    %1138 = vmatmul.f32.gmra.mxu0 %v194
    %v1139 = vpop.f32.mrf.mxu0
    %v1140 = vadd.f32 %v1027, %v1139
    %1141 = vmatmul.f32.gmra.mxu0 %v198
    %v1142 = vpop.f32.mrf.mxu0
    %v1143 = vadd.f32 %v1030, %v1142
    %1144 = vmatmul.f32.gmra.mxu0 %v202
    %v1145 = vpop.f32.mrf.mxu0
    %v1146 = vadd.f32 %v1033, %v1145
    %1147 = vmatmul.f32.gmra.mxu0 %v206
    %v1148 = vpop.f32.mrf.mxu0
    %v1149 = vadd.f32 %v1036, %v1148
    %1150 = vmatmul.f32.gmra.mxu0 %v210
    %v1151 = vpop.f32.mrf.mxu0
    %v1152 = vadd.f32 %v1039, %v1151
    %1153 = vmatmul.f32.gmra.mxu0 %v214
    %v1154 = vpop.f32.mrf.mxu0
    %v1155 = vadd.f32 %v1042, %v1154
    %1156 = vmatmul.f32.gmra.mxu0 %v218
    %v1157 = vpop.f32.mrf.mxu0
    %v1158 = vadd.f32 %v1045, %v1157
    %1159 = vmatmul.f32.gmra.mxu0 %v222
    %v1160 = vpop.f32.mrf.mxu0
    %v1161 = vadd.f32 %v1048, %v1160
    %1162 = vmatmul.f32.gmra.mxu0 %v226
    %v1163 = vpop.f32.mrf.mxu0
    %v1164 = vadd.f32 %v1051, %v1163
    %1165 = vmatmul.f32.gmra.mxu0 %v230
    %v1166 = vpop.f32.mrf.mxu0
    %v1167 = vadd.f32 %v1054, %v1166
    %1168 = vmatmul.f32.gmra.mxu0 %v234
    %v1169 = vpop.f32.mrf.mxu0
    %v1170 = vadd.f32 %v1057, %v1169
    %1171 = vmatmul.f32.gmra.mxu0 %v238
    %v1172 = vpop.f32.mrf.mxu0
    %v1173 = vadd.f32 %v1060, %v1172
    %1174 = vmatmul.f32.gmra.mxu0 %v242
    %v1175 = vpop.f32.mrf.mxu0
    %v1176 = vadd.f32 %v1063, %v1175
    %1177 = vmatmul.f32.gmra.mxu0 %v246
    %v1178 = vpop.f32.mrf.mxu0
    %v1179 = vadd.f32 %v1066, %v1178
    %1180 = vmatmul.f32.gmra.mxu0 %v250
    %v1181 = vpop.f32.mrf.mxu0
    %v1182 = vadd.f32 %v1069, %v1181
    %1183 = vmatmul.f32.gmra.mxu0 %v254
    %v1184 = vpop.f32.mrf.mxu0
    %v1185 = vadd.f32 %v1072, %v1184
    %1186 = vmatmul.f32.gmra.mxu0 %v258
    %v1187 = vpop.f32.mrf.mxu0
    %v1188 = vadd.f32 %v1075, %v1187
    %1189 = vmatmul.f32.gmra.mxu0 %v262
    %v1190 = vpop.f32.mrf.mxu0
    %v1191 = vadd.f32 %v1078, %v1190
    %1192 = vmatmul.f32.gmra.mxu0 %v266
    %v1193 = vpop.f32.mrf.mxu0
    %v1194 = vadd.f32 %v1081, %v1193
    %1195 = vmatmul.f32.gmra.mxu0 %v270
    %v1196 = vpop.f32.mrf.mxu0
    %v1197 = vadd.f32 %v1084, %v1196
    %1198 = vmatmul.f32.gmra.mxu0 %v274
    %v1199 = vpop.f32.mrf.mxu0
    %v1200 = vadd.f32 %v1087, %v1199
    %1201 = vmatmul.f32.gmra.mxu0 %v278
    %v1202 = vpop.f32.mrf.mxu0
    %v1203 = vadd.f32 %v1090, %v1202
    %1204 = vmatmul.f32.gmra.mxu0 %v282
    %v1205 = vpop.f32.mrf.mxu0
    %v1206 = vadd.f32 %v1093, %v1205
    %1207 = vmatmul.f32.gmra.mxu0 %v286
    %v1208 = vpop.f32.mrf.mxu0
    %v1209 = vadd.f32 %v1096, %v1208
    %1210 = vmatmul.f32.gmra.mxu0 %v290
    %v1211 = vpop.f32.mrf.mxu0
    %v1212 = vadd.f32 %v1099, %v1211
    %1213 = vmatmul.f32.gmra.mxu0 %v294
    %v1214 = vpop.f32.mrf.mxu0
    %v1215 = vadd.f32 %v1102, %v1214
    %1216 = vmatmul.f32.gmra.mxu0 %v298
    %v1217 = vpop.f32.mrf.mxu0
    %v1218 = vadd.f32 %v1105, %v1217
    %1219 = vmatmul.f32.gmra.mxu0 %v302
    %v1220 = vpop.f32.mrf.mxu0
    %v1221 = vadd.f32 %v1108, %v1220
    %1222 = vdwg.mxu0
    %1223 = vmatpush.msra.mxu0 %v431
    %1224 = vmatpush.msra.mxu0 %v429
    %1225 = vmatpush.msra.mxu0 %v427
    %1226 = vmatpush.msra.mxu0 %v425
    %1227 = vmatpush.msra.mxu0 %v423
    %1228 = vmatpush.msra.mxu0 %v421
    %1229 = vmatpush.msra.mxu0 %v419
    %1230 = vmatpush.msra.mxu0 %v417
    %1231 = vmatpush.msra.mxu0 %v415
    %1232 = vmatpush.msra.mxu0 %v413
    %1233 = vmatpush.msra.mxu0 %v411
    %1234 = vmatpush.msra.mxu0 %v409
    %1235 = vmatpush.msra.mxu0 %v407
    %1236 = vmatpush.msra.mxu0 %v405
    %1237 = vmatpush.msra.mxu0 %v403
    %1238 = vmatpush.msra.mxu0 %v401
    %1239 = vmatmul.f32.gmra.mxu0 %v179
    %v1240 = vpop.f32.mrf.mxu0
    %v1241 = vadd.f32 %v1128, %v1240
    %1242 = vmatmul.f32.gmra.mxu0 %v183
    %v1243 = vpop.f32.mrf.mxu0
    %v1244 = vadd.f32 %v1131, %v1243
    %1245 = vmatmul.f32.gmra.mxu0 %v187
    %v1246 = vpop.f32.mrf.mxu0
    %v1247 = vadd.f32 %v1134, %v1246
    %1248 = vmatmul.f32.gmra.mxu0 %v191
    %v1249 = vpop.f32.mrf.mxu0
    %v1250 = vadd.f32 %v1137, %v1249
    %1251 = vmatmul.f32.gmra.mxu0 %v195
    %v1252 = vpop.f32.mrf.mxu0
    %v1253 = vadd.f32 %v1140, %v1252
    %1254 = vmatmul.f32.gmra.mxu0 %v199
    %v1255 = vpop.f32.mrf.mxu0
    %v1256 = vadd.f32 %v1143, %v1255
    %1257 = vmatmul.f32.gmra.mxu0 %v203
    %v1258 = vpop.f32.mrf.mxu0
    %v1259 = vadd.f32 %v1146, %v1258
    %1260 = vmatmul.f32.gmra.mxu0 %v207
    %v1261 = vpop.f32.mrf.mxu0
    %v1262 = vadd.f32 %v1149, %v1261
    %1263 = vmatmul.f32.gmra.mxu0 %v211
    %v1264 = vpop.f32.mrf.mxu0
    %v1265 = vadd.f32 %v1152, %v1264
    %1266 = vmatmul.f32.gmra.mxu0 %v215
    %v1267 = vpop.f32.mrf.mxu0
    %v1268 = vadd.f32 %v1155, %v1267
    %1269 = vmatmul.f32.gmra.mxu0 %v219
    %v1270 = vpop.f32.mrf.mxu0
    %v1271 = vadd.f32 %v1158, %v1270
    %1272 = vmatmul.f32.gmra.mxu0 %v223
    %v1273 = vpop.f32.mrf.mxu0
    %v1274 = vadd.f32 %v1161, %v1273
    %1275 = vmatmul.f32.gmra.mxu0 %v227
    %v1276 = vpop.f32.mrf.mxu0
    %v1277 = vadd.f32 %v1164, %v1276
    %1278 = vmatmul.f32.gmra.mxu0 %v231
    %v1279 = vpop.f32.mrf.mxu0
    %v1280 = vadd.f32 %v1167, %v1279
    %1281 = vmatmul.f32.gmra.mxu0 %v235
    %v1282 = vpop.f32.mrf.mxu0
    %v1283 = vadd.f32 %v1170, %v1282
    %1284 = vmatmul.f32.gmra.mxu0 %v239
    %v1285 = vpop.f32.mrf.mxu0
    %v1286 = vadd.f32 %v1173, %v1285
    %1287 = vmatmul.f32.gmra.mxu0 %v243
    %v1288 = vpop.f32.mrf.mxu0
    %v1289 = vadd.f32 %v1176, %v1288
    %1290 = vmatmul.f32.gmra.mxu0 %v247
    %v1291 = vpop.f32.mrf.mxu0
    %v1292 = vadd.f32 %v1179, %v1291
    %1293 = vmatmul.f32.gmra.mxu0 %v251
    %v1294 = vpop.f32.mrf.mxu0
    %v1295 = vadd.f32 %v1182, %v1294
    %1296 = vmatmul.f32.gmra.mxu0 %v255
    %v1297 = vpop.f32.mrf.mxu0
    %v1298 = vadd.f32 %v1185, %v1297
    %1299 = vmatmul.f32.gmra.mxu0 %v259
    %v1300 = vpop.f32.mrf.mxu0
    %v1301 = vadd.f32 %v1188, %v1300
    %1302 = vmatmul.f32.gmra.mxu0 %v263
    %v1303 = vpop.f32.mrf.mxu0
    %v1304 = vadd.f32 %v1191, %v1303
    %1305 = vmatmul.f32.gmra.mxu0 %v267
    %v1306 = vpop.f32.mrf.mxu0
    %v1307 = vadd.f32 %v1194, %v1306
    %1308 = vmatmul.f32.gmra.mxu0 %v271
    %v1309 = vpop.f32.mrf.mxu0
    %v1310 = vadd.f32 %v1197, %v1309
    %1311 = vmatmul.f32.gmra.mxu0 %v275
    %v1312 = vpop.f32.mrf.mxu0
    %v1313 = vadd.f32 %v1200, %v1312
    %1314 = vmatmul.f32.gmra.mxu0 %v279
    %v1315 = vpop.f32.mrf.mxu0
    %v1316 = vadd.f32 %v1203, %v1315
    %1317 = vmatmul.f32.gmra.mxu0 %v283
    %v1318 = vpop.f32.mrf.mxu0
    %v1319 = vadd.f32 %v1206, %v1318
    %1320 = vmatmul.f32.gmra.mxu0 %v287
    %v1321 = vpop.f32.mrf.mxu0
    %v1322 = vadd.f32 %v1209, %v1321
    %1323 = vmatmul.f32.gmra.mxu0 %v291
    %v1324 = vpop.f32.mrf.mxu0
    %v1325 = vadd.f32 %v1212, %v1324
    %1326 = vmatmul.f32.gmra.mxu0 %v295
    %v1327 = vpop.f32.mrf.mxu0
    %v1328 = vadd.f32 %v1215, %v1327
    %1329 = vmatmul.f32.gmra.mxu0 %v299
    %v1330 = vpop.f32.mrf.mxu0
    %v1331 = vadd.f32 %v1218, %v1330
    %1332 = vmatmul.f32.gmra.mxu0 %v303
    %v1333 = vpop.f32.mrf.mxu0
    %v1334 = vadd.f32 %v1221, %v1333
    %1335 = vdwg.mxu0
    %v1336 = vadd.f32 %v112, %v789
    %v1337 = vadd.f32 %v113, %v1241
    %v1338 = vadd.f32 %v114, %v792
    %v1339 = vadd.f32 %v115, %v1244
    %v1340 = vadd.f32 %v116, %v795
    %v1341 = vadd.f32 %v117, %v1247
    %v1342 = vadd.f32 %v118, %v798
    %v1343 = vadd.f32 %v119, %v1250
    %v1344 = vadd.f32 %v120, %v801
    %v1345 = vadd.f32 %v121, %v1253
    %v1346 = vadd.f32 %v122, %v804
    %v1347 = vadd.f32 %v123, %v1256
    %v1348 = vadd.f32 %v124, %v807
    %v1349 = vadd.f32 %v125, %v1259
    %v1350 = vadd.f32 %v126, %v810
    %v1351 = vadd.f32 %v127, %v1262
    %v1352 = vadd.f32 %v128, %v813
    %v1353 = vadd.f32 %v129, %v1265
    %v1354 = vadd.f32 %v130, %v816
    %v1355 = vadd.f32 %v131, %v1268
    %v1356 = vadd.f32 %v132, %v819
    %v1357 = vadd.f32 %v133, %v1271
    %v1358 = vadd.f32 %v134, %v822
    %v1359 = vadd.f32 %v135, %v1274
    %v1360 = vadd.f32 %v136, %v825
    %v1361 = vadd.f32 %v137, %v1277
    %v1362 = vadd.f32 %v138, %v828
    %v1363 = vadd.f32 %v139, %v1280
    %v1364 = vadd.f32 %v140, %v831
    %v1365 = vadd.f32 %v141, %v1283
    %v1366 = vadd.f32 %v142, %v834
    %v1367 = vadd.f32 %v143, %v1286
    %v1368 = vadd.f32 %v144, %v837
    %v1369 = vadd.f32 %v145, %v1289
    %v1370 = vadd.f32 %v146, %v840
    %v1371 = vadd.f32 %v147, %v1292
    %v1372 = vadd.f32 %v148, %v843
    %v1373 = vadd.f32 %v149, %v1295
    %v1374 = vadd.f32 %v150, %v846
    %v1375 = vadd.f32 %v151, %v1298
    %v1376 = vadd.f32 %v152, %v849
    %v1377 = vadd.f32 %v153, %v1301
    %v1378 = vadd.f32 %v154, %v852
    %v1379 = vadd.f32 %v155, %v1304
    %v1380 = vadd.f32 %v156, %v855
    %v1381 = vadd.f32 %v157, %v1307
    %v1382 = vadd.f32 %v158, %v858
    %v1383 = vadd.f32 %v159, %v1310
    %v1384 = vadd.f32 %v160, %v861
    %v1385 = vadd.f32 %v161, %v1313
    %v1386 = vadd.f32 %v162, %v864
    %v1387 = vadd.f32 %v163, %v1316
    %v1388 = vadd.f32 %v164, %v867
    %v1389 = vadd.f32 %v165, %v1319
    %v1390 = vadd.f32 %v166, %v870
    %v1391 = vadd.f32 %v167, %v1322
    %v1392 = vadd.f32 %v168, %v873
    %v1393 = vadd.f32 %v169, %v1325
    %v1394 = vadd.f32 %v170, %v876
    %v1395 = vadd.f32 %v171, %v1328
    %v1396 = vadd.f32 %v172, %v879
    %v1397 = vadd.f32 %v173, %v1331
    %v1398 = vadd.f32 %v174, %v882
    %v1399 = vadd.f32 %v175, %v1334
    %1400 = vst [vmem:[#allocation7] sm:$0xff] %v1336
    %1401 = vst [vmem:[#allocation7 + $0x8] sm:$0xff] %v1337
    %1402 = vst [vmem:[#allocation7 + $0x10] sm:$0xff] %v1338
    %1403 = vst [vmem:[#allocation7 + $0x18] sm:$0xff] %v1339
    %1404 = vst [vmem:[#allocation7 + $0x20] sm:$0xff] %v1340
    %1405 = vst [vmem:[#allocation7 + $0x28] sm:$0xff] %v1341
    %1406 = vst [vmem:[#allocation7 + $0x30] sm:$0xff] %v1342
    %1407 = vst [vmem:[#allocation7 + $0x38] sm:$0xff] %v1343
    %1408 = vst [vmem:[#allocation7 + $0x40] sm:$0xff] %v1344
    %1409 = vst [vmem:[#allocation7 + $0x48] sm:$0xff] %v1345
    %1410 = vst [vmem:[#allocation7 + $0x50] sm:$0xff] %v1346
    %1411 = vst [vmem:[#allocation7 + $0x58] sm:$0xff] %v1347
    %1412 = vst [vmem:[#allocation7 + $0x60] sm:$0xff] %v1348
    %1413 = vst [vmem:[#allocation7 + $0x68] sm:$0xff] %v1349
    %1414 = vst [vmem:[#allocation7 + $0x70] sm:$0xff] %v1350
    %1415 = vst [vmem:[#allocation7 + $0x78] sm:$0xff] %v1351
    %1416 = vst [vmem:[#allocation7 + $0x80] sm:$0xff] %v1352
    %1417 = vst [vmem:[#allocation7 + $0x88] sm:$0xff] %v1353
    %1418 = vst [vmem:[#allocation7 + $0x90] sm:$0xff] %v1354
    %1419 = vst [vmem:[#allocation7 + $0x98] sm:$0xff] %v1355
    %1420 = vst [vmem:[#allocation7 + $0xa0] sm:$0xff] %v1356
    %1421 = vst [vmem:[#allocation7 + $0xa8] sm:$0xff] %v1357
    %1422 = vst [vmem:[#allocation7 + $0xb0] sm:$0xff] %v1358
    %1423 = vst [vmem:[#allocation7 + $0xb8] sm:$0xff] %v1359
    %1424 = vst [vmem:[#allocation7 + $0xc0] sm:$0xff] %v1360
    %1425 = vst [vmem:[#allocation7 + $0xc8] sm:$0xff] %v1361
    %1426 = vst [vmem:[#allocation7 + $0xd0] sm:$0xff] %v1362
    %1427 = vst [vmem:[#allocation7 + $0xd8] sm:$0xff] %v1363
    %1428 = vst [vmem:[#allocation7 + $0xe0] sm:$0xff] %v1364
    %1429 = vst [vmem:[#allocation7 + $0xe8] sm:$0xff] %v1365
    %1430 = vst [vmem:[#allocation7 + $0xf0] sm:$0xff] %v1366
    %1431 = vst [vmem:[#allocation7 + $0xf8] sm:$0xff] %v1367
    %1432 = vst [vmem:[#allocation7 + $0x100] sm:$0xff] %v1368
    %1433 = vst [vmem:[#allocation7 + $0x108] sm:$0xff] %v1369
    %1434 = vst [vmem:[#allocation7 + $0x110] sm:$0xff] %v1370
    %1435 = vst [vmem:[#allocation7 + $0x118] sm:$0xff] %v1371
    %1436 = vst [vmem:[#allocation7 + $0x120] sm:$0xff] %v1372
    %1437 = vst [vmem:[#allocation7 + $0x128] sm:$0xff] %v1373
    %1438 = vst [vmem:[#allocation7 + $0x130] sm:$0xff] %v1374
    %1439 = vst [vmem:[#allocation7 + $0x138] sm:$0xff] %v1375
    %1440 = vst [vmem:[#allocation7 + $0x140] sm:$0xff] %v1376
    %1441 = vst [vmem:[#allocation7 + $0x148] sm:$0xff] %v1377
    %1442 = vst [vmem:[#allocation7 + $0x150] sm:$0xff] %v1378
    %1443 = vst [vmem:[#allocation7 + $0x158] sm:$0xff] %v1379
    %1444 = vst [vmem:[#allocation7 + $0x160] sm:$0xff] %v1380
    %1445 = vst [vmem:[#allocation7 + $0x168] sm:$0xff] %v1381
    %1446 = vst [vmem:[#allocation7 + $0x170] sm:$0xff] %v1382
    %1447 = vst [vmem:[#allocation7 + $0x178] sm:$0xff] %v1383
    %1448 = vst [vmem:[#allocation7 + $0x180] sm:$0xff] %v1384
    %1449 = vst [vmem:[#allocation7 + $0x188] sm:$0xff] %v1385
    %1450 = vst [vmem:[#allocation7 + $0x190] sm:$0xff] %v1386
    %1451 = vst [vmem:[#allocation7 + $0x198] sm:$0xff] %v1387
    %1452 = vst [vmem:[#allocation7 + $0x1a0] sm:$0xff] %v1388
    %1453 = vst [vmem:[#allocation7 + $0x1a8] sm:$0xff] %v1389
    %1454 = vst [vmem:[#allocation7 + $0x1b0] sm:$0xff] %v1390
    %1455 = vst [vmem:[#allocation7 + $0x1b8] sm:$0xff] %v1391
    %1456 = vst [vmem:[#allocation7 + $0x1c0] sm:$0xff] %v1392
    %1457 = vst [vmem:[#allocation7 + $0x1c8] sm:$0xff] %v1393
    %1458 = vst [vmem:[#allocation7 + $0x1d0] sm:$0xff] %v1394
    %1459 = vst [vmem:[#allocation7 + $0x1d8] sm:$0xff] %v1395
    %1460 = vst [vmem:[#allocation7 + $0x1e0] sm:$0xff] %v1396
    %1461 = vst [vmem:[#allocation7 + $0x1e8] sm:$0xff] %v1397
    %1462 = vst [vmem:[#allocation7 + $0x1f0] sm:$0xff] %v1398
    %1463 = vst [vmem:[#allocation7 + $0x1f8] sm:$0xff] %v1399
    // Predicated region
    $region22: #{tpu_custom_call.1} parent=1 // pred_check
      _
    $region23: #{tpu_custom_call.1} parent=1 // pred_check_branch
      %1465 = sbr.rel (0) target = $region25
    $region24: #{tpu_custom_call.1} parent=1 // pred_region
      %1467 = vsyncadd [#allocation4], 0
      %s1468 = sshll.u32 [#allocation7], 4
      %s1469 = int_to_ptr.vmem [resolvable:$true] %s1468
      %s1470 = sshll.u32 %s2, 4
      %s1471 = int_to_ptr.hbm [resolvable:$true] %s1470
      %1476 = dma.vmem_to_hbm [thread:$0]  %s1469, 8192, %s1471, [#allocation4], 256, 256, 16
    $region25: #{tpu_custom_call.1} parent=1 // pred_fallthru
      _
    // Predicated region
    $region26: #{tpu_custom_call.1} parent=1 // pred_check
      _
    $region27: #{tpu_custom_call.1} parent=1 // pred_check_branch
      %1478 = sbr.rel (0) target = $region29
    $region28: #{tpu_custom_call.1} parent=1 // pred_region
      %1480 = dma.done [#allocation4], 8192
    $region29: #{tpu_custom_call.1} parent=1 // pred_fallthru
      _
    %1481 = vsyncpa [#allocation3], 1
    %1482 = vsyncpa [#allocation6], 1
    %1483 = vsyncpa [#allocation4], 1

</llo_original>
